<compile_context>
chip_gen: v6e
topology: v6e:2x2x1
jax: 0.10.0
libtpu: 0.0.40
codegen_flags: <defaults>
</compile_context>

<pallas_src>
import functools

import jax
import jax.numpy as jnp
from jax.experimental import pallas as pl
from jax.experimental.pallas import tpu as pltpu

IN_DIM = 3047
OUT_DIM = 29


def _round_up(x, m):
    return ((x + m - 1) // m) * m


def _fused_mlp_kernel(x_ref, w1_ref, b1_ref, wh_ref, bh_ref, wo_ref, bo_ref,
                      o_ref, acc_ref, *, num_hidden):
    """Fused MLP: grid axis 0 walks the K (3047) reduction of layer 1.

    Layers 2..L and the output layer are computed on the last K step with
    their (small) weights held resident in VMEM.
    """
    k = pl.program_id(0)

    @pl.when(k == 0)
    def _init():
        acc_ref[...] = jnp.zeros_like(acc_ref)

    # Layer-1 partial product for this K tile (bf16 x bf16 -> f32 on the MXU).
    acc_ref[...] += jnp.dot(
        x_ref[...], w1_ref[...], preferred_element_type=jnp.float32
    )

    @pl.when(k == pl.num_programs(0) - 1)
    def _finish():
        cdt = w1_ref.dtype
        # Layer 1 epilogue: bias + ReLU.  Dropout: identity (inference).
        h = jnp.maximum(acc_ref[...] + b1_ref[...], 0.0)
        # Hidden layers (weights are VMEM-resident; static unrolled loop).
        for i in range(num_hidden):
            h = jnp.dot(
                h.astype(cdt), wh_ref[i], preferred_element_type=jnp.float32
            ) + bh_ref[i]
            h = jnp.maximum(h, 0.0)
        # Output layer (no activation).
        y = jnp.dot(
            h.astype(cdt), wo_ref[...], preferred_element_type=jnp.float32
        ) + bo_ref[...]
        o_ref[...] = y.astype(o_ref.dtype)


def init_mlp_params(key, num_fc_layers, num_fc_units,
                    in_dim=IN_DIM, out_dim=OUT_DIM):
    """Deterministic PyTorch-style (uniform +-1/sqrt(fan_in)) init, f32 masters."""
    dims = [in_dim] + [num_fc_units] * (num_fc_layers + 1) + [out_dim]
    params = []
    for i in range(len(dims) - 1):
        fan_in, fan_out = dims[i], dims[i + 1]
        key, kw, kb = jax.random.split(key, 3)
        bound = 1.0 / jnp.sqrt(fan_in)
        w = jax.random.uniform(
            kw, (fan_in, fan_out), jnp.float32, -bound, bound
        )
        b = jax.random.uniform(kb, (fan_out,), jnp.float32, -bound, bound)
        params.append((w, b))
    return params


def pack_mlp_params(params, compute_dtype=jnp.bfloat16):
    """Pad to TPU tile sizes, cast matmul weights to bf16, stack hidden layers.

    Done ONCE at init so the forward path never re-pads weights.
    Biases stay f32 (added to the f32 accumulator).
    """
    (w1, b1) = params[0]
    hidden = params[1:-1]
    (wo, bo) = params[-1]

    in_dim, H = w1.shape
    out_dim = wo.shape[1]
    K_pad = _round_up(in_dim, 128)
    H_pad = _round_up(H, 128)
    N_pad = _round_up(out_dim, 128)

    w1_p = jnp.zeros((K_pad, H_pad), compute_dtype)
    w1_p = w1_p.at[:in_dim, :H].set(w1.astype(compute_dtype))
    b1_p = jnp.zeros((1, H_pad), jnp.float32).at[0, :H].set(b1)

    L = len(hidden)
    L_eff = max(L, 1)
    wh_p = jnp.zeros((L_eff, H_pad, H_pad), compute_dtype)
    bh_p = jnp.zeros((L_eff, 1, H_pad), jnp.float32)
    for i, (w, b) in enumerate(hidden):
        wh_p = wh_p.at[i, :H, :H].set(w.astype(compute_dtype))
        bh_p = bh_p.at[i, 0, :H].set(b)

    wo_p = jnp.zeros((H_pad, N_pad), compute_dtype)
    wo_p = wo_p.at[:H, :out_dim].set(wo.astype(compute_dtype))
    bo_p = jnp.zeros((1, N_pad), jnp.float32).at[0, :out_dim].set(bo)

    return dict(
        w1=w1_p, b1=b1_p, wh=wh_p, bh=bh_p, wo=wo_p, bo=bo_p,
        num_hidden=L, in_dim=in_dim, out_dim=out_dim,
        compute_dtype=compute_dtype,
    )


def mlp_forward(packed, x):
    """Single fused pallas_call for the whole MLP (inference semantics)."""
    M, K = x.shape
    assert K == packed["in_dim"]
    cdt = packed["compute_dtype"]

    K_pad, H_pad = packed["w1"].shape
    N_pad = packed["wo"].shape[1]
    L_eff = packed["wh"].shape[0]

    M_pad = _round_up(max(M, 8), 8)

    # Only the (small) activation is padded per call; weights were padded at init.
    x_p = jnp.zeros((M_pad, K_pad), cdt).at[:M, :K].set(x.astype(cdt))

    # Pick the largest K tile whose layer-1 weight block fits a modest VMEM
    # budget (safe for v7x's smaller VMEM).  For small H this gives grid=(1,).
    bytes_per = jnp.dtype(cdt).itemsize
    budget = 8 * 1024 * 1024
    tk = K_pad
    for cand in (K_pad, 1536, 1024, 512, 256, 128):
        if K_pad % cand == 0 and cand * H_pad * bytes_per <= budget:
            tk = cand
            break
    grid = (K_pad // tk,)

    kernel = functools.partial(
        _fused_mlp_kernel, num_hidden=packed["num_hidden"]
    )

    out = pl.pallas_call(
        kernel,
        out_shape=jax.ShapeDtypeStruct((M_pad, N_pad), jnp.float32),
        grid_spec=pltpu.PrefetchScalarGridSpec(
            num_scalar_prefetch=0,
            grid=grid,
            in_specs=[
                pl.BlockSpec((M_pad, tk), lambda k: (0, k)),             # x
                pl.BlockSpec((tk, H_pad), lambda k: (k, 0)),             # w1
                pl.BlockSpec((1, H_pad), lambda k: (0, 0)),              # b1
                pl.BlockSpec((L_eff, H_pad, H_pad), lambda k: (0, 0, 0)),  # hidden Ws
                pl.BlockSpec((L_eff, 1, H_pad), lambda k: (0, 0, 0)),      # hidden bs
                pl.BlockSpec((H_pad, N_pad), lambda k: (0, 0)),          # wo
                pl.BlockSpec((1, N_pad), lambda k: (0, 0)),              # bo
            ],
            out_specs=pl.BlockSpec((M_pad, N_pad), lambda k: (0, 0)),
            scratch_shapes=[pltpu.VMEM((M_pad, H_pad), jnp.float32)],
        ),
        compiler_params=pltpu.CompilerParams(
            dimension_semantics=("arbitrary",),
        ),
    )(x_p, packed["w1"], packed["b1"], packed["wh"], packed["bh"],
      packed["wo"], packed["bo"])

    return out[:M, :packed["out_dim"]]


def mlp_forward_ref(params, x):
    """Pure-f32 reference (eval mode: Dropout = identity)."""
    n = len(params)
    for i, (w, b) in enumerate(params):
        x = x @ w + b
        if i < n - 1:
            x = jnp.maximum(x, 0.0)
    return x


if __name__ == "__main__":
    num_fc_layers = 2
    num_fc_units = 32
    batch = 2

    key = jax.random.PRNGKey(0)
    key_params, key_x = jax.random.split(key)
    params = init_mlp_params(key_params, num_fc_layers, num_fc_units)
    packed = pack_mlp_params(params)  # pad + bf16-cast once, outside the fwd path
    x = jax.random.normal(key_x, (batch, IN_DIM), jnp.float32)

    out = mlp_forward(packed, x)
    out = jax.block_until_ready(out)
    assert out.shape == (batch, OUT_DIM), out.shape

    ref = mlp_forward_ref(params, x)
    # bf16 weights/activations vs f32 reference -> loosened tolerance.
    max_err = float(jnp.max(jnp.abs(out - ref)))
    assert jnp.allclose(out, ref, atol=3e-2, rtol=3e-2), max_err

    print("KERNEL_OK")
</pallas_src>

<mosaic_0001>
module attributes {stable_mosaic.version = 11 : i64} {
  func.func @_fused_mlp_kernel(%arg0: i32, %arg1: memref<8x3072xbf16, #tpu.memory_space<vmem>>, %arg2: memref<3072x128xbf16, #tpu.memory_space<vmem>>, %arg3: memref<1x128xf32, #tpu.memory_space<vmem>>, %arg4: memref<2x128x128xbf16, #tpu.memory_space<vmem>>, %arg5: memref<2x1x128xf32, #tpu.memory_space<vmem>>, %arg6: memref<128x128xbf16, #tpu.memory_space<vmem>>, %arg7: memref<1x128xf32, #tpu.memory_space<vmem>>, %arg8: memref<8x128xf32, #tpu.memory_space<vmem>>, %arg9: memref<8x128xf32, #tpu.memory_space<vmem>>) attributes {dimension_semantics = [#tpu.dimension_semantics<arbitrary>], iteration_bounds = array<i64: 1>, scalar_prefetch = 0 : i64, scratch_operands = 1 : i64, tpu.core_type = #tpu.core_type<tc>, window_params = [{transform_indices = @transform_0, window_bounds = array<i64: 8, 3072>}, {transform_indices = @transform_1, window_bounds = array<i64: 3072, 128>}, {pipeline_mode = #tpu.pipeline_mode<synchronous>, transform_indices = @transform_2, window_bounds = array<i64: 1, 128>}, {pipeline_mode = #tpu.pipeline_mode<synchronous>, transform_indices = @transform_3, window_bounds = array<i64: 2, 128, 128>}, {pipeline_mode = #tpu.pipeline_mode<synchronous>, transform_indices = @transform_4, window_bounds = array<i64: 2, 1, 128>}, {pipeline_mode = #tpu.pipeline_mode<synchronous>, transform_indices = @transform_5, window_bounds = array<i64: 128, 128>}, {pipeline_mode = #tpu.pipeline_mode<synchronous>, transform_indices = @transform_6, window_bounds = array<i64: 1, 128>}, {pipeline_mode = #tpu.pipeline_mode<synchronous>, transform_indices = @transform_7, window_bounds = array<i64: 8, 128>}]} {
    %c0_i32 = arith.constant 0 : i32
    %0 = arith.cmpi eq, %arg0, %c0_i32 : i32
    %1 = arith.extui %0 : i1 to i32
    %c0_i32_0 = arith.constant 0 : i32
    %2 = arith.cmpi ne, %1, %c0_i32_0 : i32
    scf.if %2 {
      %cst_10 = arith.constant 0.000000e+00 : f32
      %12 = vector.broadcast %cst_10 : f32 to vector<8x128xf32>
      %c0_11 = arith.constant 0 : index
      %c0_12 = arith.constant 0 : index
      %13 = vector.load %arg9[%c0_11, %c0_12] : memref<8x128xf32, #tpu.memory_space<vmem>>, vector<8x128xf32>
      tpu.vector_store %arg9[%c0_11, %c0_12], %12 {strides = array<i32>} : memref<8x128xf32, #tpu.memory_space<vmem>>, vector<8x128xf32>,
    } else {
    }
    %c0 = arith.constant 0 : index
    %c0_1 = arith.constant 0 : index
    %3 = vector.load %arg9[%c0, %c0_1] : memref<8x128xf32, #tpu.memory_space<vmem>>, vector<8x128xf32>
    %c0_2 = arith.constant 0 : index
    %c0_3 = arith.constant 0 : index
    %4 = vector.load %arg1[%c0_2, %c0_3] : memref<8x3072xbf16, #tpu.memory_space<vmem>>, vector<8x3072xbf16>
    %c0_4 = arith.constant 0 : index
    %c0_5 = arith.constant 0 : index
    %5 = vector.load %arg2[%c0_4, %c0_5] : memref<3072x128xbf16, #tpu.memory_space<vmem>>, vector<3072x128xbf16>
    %cst = arith.constant dense<0.000000e+00> : vector<8x128xf32>
    %6 = tpu.matmul %4, %5, %cst {dimension_numbers = #tpu.dot_dimension_numbers<[1], [0], [0], [1], [0, 0, 1, 1], [], []>} : vector<8x3072xbf16>, vector<3072x128xbf16>, vector<8x128xf32> -> vector<8x128xf32>
    %7 = arith.addf %3, %6 : vector<8x128xf32>
    %c0_6 = arith.constant 0 : index
    %c0_7 = arith.constant 0 : index
    %8 = vector.load %arg9[%c0_6, %c0_7] : memref<8x128xf32, #tpu.memory_space<vmem>>, vector<8x128xf32>
    tpu.vector_store %arg9[%c0_6, %c0_7], %7 {strides = array<i32>} : memref<8x128xf32, #tpu.memory_space<vmem>>, vector<8x128xf32>,
    %c0_i32_8 = arith.constant 0 : i32
    %9 = arith.cmpi eq, %arg0, %c0_i32_8 : i32
    %10 = arith.extui %9 : i1 to i32
    %c0_i32_9 = arith.constant 0 : i32
    %11 = arith.cmpi ne, %10, %c0_i32_9 : i32
    scf.if %11 {
      %c0_10 = arith.constant 0 : index
      %c0_11 = arith.constant 0 : index
      %12 = vector.load %arg9[%c0_10, %c0_11] : memref<8x128xf32, #tpu.memory_space<vmem>>, vector<8x128xf32>
      %c0_12 = arith.constant 0 : index
      %c0_13 = arith.constant 0 : index
      %13 = vector.load %arg3[%c0_12, %c0_13] : memref<1x128xf32, #tpu.memory_space<vmem>>, vector<1x128xf32>
      %14 = vector.broadcast %13 : vector<1x128xf32> to vector<8x128xf32>
      %15 = arith.addf %12, %14 : vector<8x128xf32>
      %cst_14 = arith.constant 0.000000e+00 : f32
      %16 = vector.broadcast %cst_14 : f32 to vector<8x128xf32>
      %17 = arith.maximumf %15, %16 : vector<8x128xf32>
      %18 = arith.truncf %17 : vector<8x128xf32> to vector<8x128xbf16>
      %c0_15 = arith.constant 0 : index
      %c0_16 = arith.constant 0 : index
      %c0_17 = arith.constant 0 : index
      %19 = vector.load %arg4[%c0_15, %c0_16, %c0_17] : memref<2x128x128xbf16, #tpu.memory_space<vmem>>, vector<1x128x128xbf16>
      %20 = vector.shape_cast %19 : vector<1x128x128xbf16> to vector<128x128xbf16>
      %cst_18 = arith.constant dense<0.000000e+00> : vector<8x128xf32>
      %21 = tpu.matmul %18, %20, %cst_18 {dimension_numbers = #tpu.dot_dimension_numbers<[1], [0], [0], [1], [0, 0, 1, 1], [], []>} : vector<8x128xbf16>, vector<128x128xbf16>, vector<8x128xf32> -> vector<8x128xf32>
      %c0_19 = arith.constant 0 : index
      %c0_20 = arith.constant 0 : index
      %c0_21 = arith.constant 0 : index
      %22 = vector.load %arg5[%c0_19, %c0_20, %c0_21] : memref<2x1x128xf32, #tpu.memory_space<vmem>>, vector<1x1x128xf32>
      %23 = vector.shape_cast %22 : vector<1x1x128xf32> to vector<1x128xf32>
      %24 = vector.broadcast %23 : vector<1x128xf32> to vector<8x128xf32>
      %25 = arith.addf %21, %24 : vector<8x128xf32>
      %cst_22 = arith.constant 0.000000e+00 : f32
      %26 = vector.broadcast %cst_22 : f32 to vector<8x128xf32>
      %27 = arith.maximumf %25, %26 : vector<8x128xf32>
      %28 = arith.truncf %27 : vector<8x128xf32> to vector<8x128xbf16>
      %c1 = arith.constant 1 : index
      %c0_23 = arith.constant 0 : index
      %c0_24 = arith.constant 0 : index
      %29 = vector.load %arg4[%c1, %c0_23, %c0_24] : memref<2x128x128xbf16, #tpu.memory_space<vmem>>, vector<1x128x128xbf16>
      %30 = vector.shape_cast %29 : vector<1x128x128xbf16> to vector<128x128xbf16>
      %cst_25 = arith.constant dense<0.000000e+00> : vector<8x128xf32>
      %31 = tpu.matmul %28, %30, %cst_25 {dimension_numbers = #tpu.dot_dimension_numbers<[1], [0], [0], [1], [0, 0, 1, 1], [], []>} : vector<8x128xbf16>, vector<128x128xbf16>, vector<8x128xf32> -> vector<8x128xf32>
      %c1_26 = arith.constant 1 : index
      %c0_27 = arith.constant 0 : index
      %c0_28 = arith.constant 0 : index
      %32 = vector.load %arg5[%c1_26, %c0_27, %c0_28] : memref<2x1x128xf32, #tpu.memory_space<vmem>>, vector<1x1x128xf32>
      %33 = vector.shape_cast %32 : vector<1x1x128xf32> to vector<1x128xf32>
      %34 = vector.broadcast %33 : vector<1x128xf32> to vector<8x128xf32>
      %35 = arith.addf %31, %34 : vector<8x128xf32>
      %cst_29 = arith.constant 0.000000e+00 : f32
      %36 = vector.broadcast %cst_29 : f32 to vector<8x128xf32>
      %37 = arith.maximumf %35, %36 : vector<8x128xf32>
      %38 = arith.truncf %37 : vector<8x128xf32> to vector<8x128xbf16>
      %c0_30 = arith.constant 0 : index
      %c0_31 = arith.constant 0 : index
      %39 = vector.load %arg6[%c0_30, %c0_31] : memref<128x128xbf16, #tpu.memory_space<vmem>>, vector<128x128xbf16>
      %cst_32 = arith.constant dense<0.000000e+00> : vector<8x128xf32>
      %40 = tpu.matmul %38, %39, %cst_32 {dimension_numbers = #tpu.dot_dimension_numbers<[1], [0], [0], [1], [0, 0, 1, 1], [], []>} : vector<8x128xbf16>, vector<128x128xbf16>, vector<8x128xf32> -> vector<8x128xf32>
      %c0_33 = arith.constant 0 : index
      %c0_34 = arith.constant 0 : index
      %41 = vector.load %arg7[%c0_33, %c0_34] : memref<1x128xf32, #tpu.memory_space<vmem>>, vector<1x128xf32>
      %42 = vector.broadcast %41 : vector<1x128xf32> to vector<8x128xf32>
      %43 = arith.addf %40, %42 : vector<8x128xf32>
      %c0_35 = arith.constant 0 : index
      %c0_36 = arith.constant 0 : index
      %44 = vector.load %arg8[%c0_35, %c0_36] : memref<8x128xf32, #tpu.memory_space<vmem>>, vector<8x128xf32>
      tpu.vector_store %arg8[%c0_35, %c0_36], %43 {strides = array<i32>} : memref<8x128xf32, #tpu.memory_space<vmem>>, vector<8x128xf32>,
    } else {
    }
    return
  }
  func.func @transform_0(%arg0: i32) -> (i32, i32) {
    %c0_i32 = arith.constant 0 : i32
    %c0_i32_0 = arith.constant 0 : i32
    return %c0_i32, %arg0 : i32, i32
  }
  func.func @transform_1(%arg0: i32) -> (i32, i32) {
    %c0_i32 = arith.constant 0 : i32
    %c0_i32_0 = arith.constant 0 : i32
    return %arg0, %c0_i32 : i32, i32
  }
  func.func @transform_2(%arg0: i32) -> (i32, i32) {
    %c0_i32 = arith.constant 0 : i32
    %c0_i32_0 = arith.constant 0 : i32
    %c0_i32_1 = arith.constant 0 : i32
    return %c0_i32, %c0_i32_0 : i32, i32
  }
  func.func @transform_3(%arg0: i32) -> (i32, i32, i32) {
    %c0_i32 = arith.constant 0 : i32
    %c0_i32_0 = arith.constant 0 : i32
    %c0_i32_1 = arith.constant 0 : i32
    %c0_i32_2 = arith.constant 0 : i32
    return %c0_i32, %c0_i32_0, %c0_i32_1 : i32, i32, i32
  }
  func.func @transform_4(%arg0: i32) -> (i32, i32, i32) {
    %c0_i32 = arith.constant 0 : i32
    %c0_i32_0 = arith.constant 0 : i32
    %c0_i32_1 = arith.constant 0 : i32
    %c0_i32_2 = arith.constant 0 : i32
    return %c0_i32, %c0_i32_0, %c0_i32_1 : i32, i32, i32
  }
  func.func @transform_5(%arg0: i32) -> (i32, i32) {
    %c0_i32 = arith.constant 0 : i32
    %c0_i32_0 = arith.constant 0 : i32
    %c0_i32_1 = arith.constant 0 : i32
    return %c0_i32, %c0_i32_0 : i32, i32
  }
  func.func @transform_6(%arg0: i32) -> (i32, i32) {
    %c0_i32 = arith.constant 0 : i32
    %c0_i32_0 = arith.constant 0 : i32
    %c0_i32_1 = arith.constant 0 : i32
    return %c0_i32, %c0_i32_0 : i32, i32
  }
  func.func @transform_7(%arg0: i32) -> (i32, i32) {
    %c0_i32 = arith.constant 0 : i32
    %c0_i32_0 = arith.constant 0 : i32
    %c0_i32_1 = arith.constant 0 : i32
    return %c0_i32, %c0_i32_0 : i32, i32
  }
}

</mosaic_0001>

<llo_original>
// kernel: tpu_custom_call.1
$region0: #{tpu_custom_call.1}
  #allocation0 [shape = 'u32[]', space=smem, size = 0x4, offset = 0x4, fixed_abs, tag = 'smem constant byte address 0x4 - core index']
  #allocation1 [shape = 'u32[144,128]{1,0:T(1,128)}', space=vmem, size = 0x12000, scoped, tag = 'internal scratch']
  #allocation2 [shape = 'f32[8,128]{1,0:T(8,128)}', space=vmem, size = 0x1000, scoped, tag = 'scratch operand']
  %s0 = inlined_call_operand.hbm [shape: bf16[8,3072], index: 0, kind: input, shape index: {}]
  %s1 = inlined_call_operand.hbm [shape: bf16[3072,128], index: 1, kind: input, shape index: {}]
  %s2 = inlined_call_operand.vmem [shape: f32[1,128], index: 2, kind: input, shape index: {}]
  %s3 = inlined_call_operand.hbm [shape: bf16[2,128,128], index: 3, kind: input, shape index: {}]
  %s4 = inlined_call_operand.vmem [shape: f32[2,1,128], index: 4, kind: input, shape index: {}]
  %s5 = inlined_call_operand.hbm [shape: bf16[128,128], index: 5, kind: input, shape index: {}]
  %s6 = inlined_call_operand.vmem [shape: f32[1,128], index: 6, kind: input, shape index: {}]
  %s7 = inlined_call_operand.hbm [shape: f32[8,128], index: 7, kind: output, shape index: {}]
  %s8 = sld [smem:[#allocation0]]
  $region62: #{tpu_custom_call.1} parent=0
    _
  %s10 = ssub.s32 1, %s8
  %s11 = scalar_select 0, %s10, %s8
  $region1: #{tpu_custom_call.1} parent=0
    #allocation3 [shape = 'u8[49152]{0}', space=vmem, size = 0xc000, scoped, tag = 'input window, operand 0, single buffered']
    #allocation4 [shape = 's32[1]{0}', space=sflag, size = 0x4, scoped, tag = 'scoped memory for tpu_custom_call.1']
    #allocation5 [shape = 's32[1]{0}', space=sflag, size = 0x4, scoped, tag = 'scoped memory for tpu_custom_call.1']
    #allocation6 [shape = 'u8[786432]{0}', space=vmem, size = 0xc0000, scoped, tag = 'input window, operand 1, single buffered']
    #allocation7 [shape = 's32[1]{0}', space=sflag, size = 0x4, scoped, tag = 'scoped memory for tpu_custom_call.1']
    #allocation8 [shape = 'u8[65536]{0}', space=vmem, size = 0x10000, scoped, tag = 'input window, operand 3, single buffered']
    #allocation9 [shape = 'u8[32768]{0}', space=vmem, size = 0x8000, scoped, tag = 'input window, operand 5, single buffered']
    #allocation10 [shape = 's32[1]{0}', space=sflag, size = 0x4, scoped, tag = 'scoped memory for tpu_custom_call.1']
    #allocation11 [shape = 'u8[4096]{0}', space=vmem, size = 0x1000, scoped, tag = 'output window, operand 0, single buffered']
    %12 = vsyncpa [#allocation4], 0
    %13 = vsyncpa [#allocation7], 0
    %14 = vsyncpa [#allocation10], 0
    %15 = vsyncpa [#allocation5], 0
    // Predicated region
    $region2: #{tpu_custom_call.1} parent=1 // pred_check
      _
    $region3: #{tpu_custom_call.1} parent=1 // pred_check_branch
      %17 = sbr.rel (0) target = $region5
    $region4: #{tpu_custom_call.1} parent=1 // pred_region
      %s19 = ssub.s32 1536, 1536
      %20 = vsyncadd [#allocation4], %s19
      %s22 = sshll.u32 [#allocation3], 4
      %s23 = int_to_ptr.vmem [resolvable:$true] %s22
      %25 = dma.hbm_to_vmem [thread:$0]  %s0, 1536, %s23, [#allocation4]
    $region5: #{tpu_custom_call.1} parent=1 // pred_fallthru
      _
    // Predicated region
    $region6: #{tpu_custom_call.1} parent=1 // pred_check
      _
    $region7: #{tpu_custom_call.1} parent=1 // pred_check_branch
      %27 = sbr.rel (0) target = $region9
    $region8: #{tpu_custom_call.1} parent=1 // pred_region
      %s29 = ssub.s32 24576, 24576
      %30 = vsyncadd [#allocation7], %s29
      %s31 = sshll.u32 [#allocation6], 4
      %s32 = int_to_ptr.vmem [resolvable:$true] %s31
      %37 = dma.hbm_to_vmem [thread:$0]  %s1, 24576, %s32, [#allocation7], 64, 64, 4
    $region9: #{tpu_custom_call.1} parent=1 // pred_fallthru
      _
    // Predicated region
    $region10: #{tpu_custom_call.1} parent=1 // pred_check
      _
    $region11: #{tpu_custom_call.1} parent=1 // pred_check_branch
      %39 = sbr.rel (0) target = $region13
    $region12: #{tpu_custom_call.1} parent=1 // pred_region
      _
    $region13: #{tpu_custom_call.1} parent=1 // pred_fallthru
      _
    // Predicated region
    $region14: #{tpu_custom_call.1} parent=1 // pred_check
      _
    $region15: #{tpu_custom_call.1} parent=1 // pred_check_branch
      %41 = sbr.rel (0) target = $region17
    $region16: #{tpu_custom_call.1} parent=1 // pred_region
      %s43 = ssub.s32 2048, 2048
      %44 = vsyncadd [#allocation7], %s43
      %s45 = sshll.u32 [#allocation8], 4
      %s46 = int_to_ptr.vmem [resolvable:$true] %s45
      %51 = dma.hbm_to_vmem [thread:$0]  %s3, 2048, %s46, [#allocation7], 64, 64, 4
    $region17: #{tpu_custom_call.1} parent=1 // pred_fallthru
      _
    // Predicated region
    $region18: #{tpu_custom_call.1} parent=1 // pred_check
      _
    $region19: #{tpu_custom_call.1} parent=1 // pred_check_branch
      %53 = sbr.rel (0) target = $region21
    $region20: #{tpu_custom_call.1} parent=1 // pred_region
      _
    $region21: #{tpu_custom_call.1} parent=1 // pred_fallthru
      _
    // Predicated region
    $region22: #{tpu_custom_call.1} parent=1 // pred_check
      _
    $region23: #{tpu_custom_call.1} parent=1 // pred_check_branch
      %55 = sbr.rel (0) target = $region25
    $region24: #{tpu_custom_call.1} parent=1 // pred_region
      %s57 = ssub.s32 1024, 1024
      %58 = vsyncadd [#allocation10], %s57
      %s59 = sshll.u32 [#allocation9], 4
      %s60 = int_to_ptr.vmem [resolvable:$true] %s59
      %65 = dma.hbm_to_vmem [thread:$0]  %s5, 1024, %s60, [#allocation10], 64, 64, 4
    $region25: #{tpu_custom_call.1} parent=1 // pred_fallthru
      _
    // Predicated region
    $region26: #{tpu_custom_call.1} parent=1 // pred_check
      _
    $region27: #{tpu_custom_call.1} parent=1 // pred_check_branch
      %67 = sbr.rel (0) target = $region29
    $region28: #{tpu_custom_call.1} parent=1 // pred_region
      _
    $region29: #{tpu_custom_call.1} parent=1 // pred_fallthru
      _
    // Predicated region
    $region30: #{tpu_custom_call.1} parent=1 // pred_check
      _
    $region31: #{tpu_custom_call.1} parent=1 // pred_check_branch
      %69 = sbr.rel (0) target = $region33
    $region32: #{tpu_custom_call.1} parent=1 // pred_region
      %70 = dma.done [#allocation4], 1536
    $region33: #{tpu_custom_call.1} parent=1 // pred_fallthru
      _
    // Predicated region
    $region34: #{tpu_custom_call.1} parent=1 // pred_check
      _
    $region35: #{tpu_custom_call.1} parent=1 // pred_check_branch
      %72 = sbr.rel (0) target = $region37
    $region36: #{tpu_custom_call.1} parent=1 // pred_region
      %73 = dma.done [#allocation7], 24576
    $region37: #{tpu_custom_call.1} parent=1 // pred_fallthru
      _
    // Predicated region
    $region38: #{tpu_custom_call.1} parent=1 // pred_check
      _
    $region39: #{tpu_custom_call.1} parent=1 // pred_check_branch
      %75 = sbr.rel (0) target = $region41
    $region40: #{tpu_custom_call.1} parent=1 // pred_region
      %76 = dma.done [#allocation7], 2048
    $region41: #{tpu_custom_call.1} parent=1 // pred_fallthru
      _
    // Predicated region
    $region42: #{tpu_custom_call.1} parent=1 // pred_check
      _
    $region43: #{tpu_custom_call.1} parent=1 // pred_check_branch
      %78 = sbr.rel (0) target = $region45
    $region44: #{tpu_custom_call.1} parent=1 // pred_region
      %79 = dma.done [#allocation10], 1024
    $region45: #{tpu_custom_call.1} parent=1 // pred_fallthru
      _
    %p81 = scmp.eq.s32.totalorder 0, 0
    // Predicated region
    $region46: #{tpu_custom_call.1} parent=1 // pred_check
      %p82 = pneg %p81
    $region47: #{tpu_custom_call.1} parent=1 // pred_check_branch
      %84 = sbr.rel (%p82) target = $region49
    $region48: #{tpu_custom_call.1} parent=1 // pred_region
      %85 = vst [vmem:[#allocation2] sm:$0xff] 0.0
    $region49: #{tpu_custom_call.1} parent=1 // pred_fallthru
      _
    %v86 = vld [vmem:[#allocation2] sm:$0xff]
    %v87 = vld [vmem:[#allocation3] sm:$0xff]
    %v88 = vld [vmem:[#allocation3 + $0x8] sm:$0xff]
    %v89 = vld [vmem:[#allocation3 + $0x10] sm:$0xff]
    %v90 = vld [vmem:[#allocation3 + $0x18] sm:$0xff]
    %v91 = vld [vmem:[#allocation3 + $0x20] sm:$0xff]
    %v92 = vld [vmem:[#allocation3 + $0x28] sm:$0xff]
    %v93 = vld [vmem:[#allocation3 + $0x30] sm:$0xff]
    %v94 = vld [vmem:[#allocation3 + $0x38] sm:$0xff]
    %v95 = vld [vmem:[#allocation3 + $0x40] sm:$0xff]
    %v96 = vld [vmem:[#allocation3 + $0x48] sm:$0xff]
    %v97 = vld [vmem:[#allocation3 + $0x50] sm:$0xff]
    %v98 = vld [vmem:[#allocation3 + $0x58] sm:$0xff]
    %v99 = vld [vmem:[#allocation6] sm:$0xf]
    %v100 = vld [vmem:[#allocation6 + $0x4] sm:$0xf]
    %v101 = vld [vmem:[#allocation6 + $0x8] sm:$0xf]
    %v102 = vld [vmem:[#allocation6 + $0xc] sm:$0xf]
    %v103 = vld [vmem:[#allocation6 + $0x10] sm:$0xf]
    %v104 = vld [vmem:[#allocation6 + $0x14] sm:$0xf]
    %v105 = vld [vmem:[#allocation6 + $0x18] sm:$0xf]
    %v106 = vld [vmem:[#allocation6 + $0x1c] sm:$0xf]
    %v107 = vld [vmem:[#allocation6 + $0x20] sm:$0xf]
    %v108 = vld [vmem:[#allocation6 + $0x24] sm:$0xf]
    %v109 = vld [vmem:[#allocation6 + $0x28] sm:$0xf]
    %v110 = vld [vmem:[#allocation6 + $0x2c] sm:$0xf]
    %v111 = vld [vmem:[#allocation6 + $0x30] sm:$0xf]
    %v112 = vld [vmem:[#allocation6 + $0x34] sm:$0xf]
    %v113 = vld [vmem:[#allocation6 + $0x38] sm:$0xf]
    %v114 = vld [vmem:[#allocation6 + $0x3c] sm:$0xf]
    %v115 = vld [vmem:[#allocation6 + $0x40] sm:$0xf]
    %v116 = vld [vmem:[#allocation6 + $0x44] sm:$0xf]
    %v117 = vld [vmem:[#allocation6 + $0x48] sm:$0xf]
    %v118 = vld [vmem:[#allocation6 + $0x4c] sm:$0xf]
    %v119 = vld [vmem:[#allocation6 + $0x50] sm:$0xf]
    %v120 = vld [vmem:[#allocation6 + $0x54] sm:$0xf]
    %v121 = vld [vmem:[#allocation6 + $0x58] sm:$0xf]
    %v122 = vld [vmem:[#allocation6 + $0x5c] sm:$0xf]
    %v123 = vld [vmem:[#allocation6 + $0x60] sm:$0xf]
    %v124 = vld [vmem:[#allocation6 + $0x64] sm:$0xf]
    %v125 = vld [vmem:[#allocation6 + $0x68] sm:$0xf]
    %v126 = vld [vmem:[#allocation6 + $0x6c] sm:$0xf]
    %v127 = vld [vmem:[#allocation6 + $0x70] sm:$0xf]
    %v128 = vld [vmem:[#allocation6 + $0x74] sm:$0xf]
    %v129 = vld [vmem:[#allocation6 + $0x78] sm:$0xf]
    %v130 = vld [vmem:[#allocation6 + $0x7c] sm:$0xf]
    %v131 = vld [vmem:[#allocation6 + $0x80] sm:$0xf]
    %v132 = vld [vmem:[#allocation6 + $0x84] sm:$0xf]
    %v133 = vld [vmem:[#allocation6 + $0x88] sm:$0xf]
    %v134 = vld [vmem:[#allocation6 + $0x8c] sm:$0xf]
    %v135 = vld [vmem:[#allocation6 + $0x90] sm:$0xf]
    %v136 = vld [vmem:[#allocation6 + $0x94] sm:$0xf]
    %v137 = vld [vmem:[#allocation6 + $0x98] sm:$0xf]
    %v138 = vld [vmem:[#allocation6 + $0x9c] sm:$0xf]
    %v139 = vld [vmem:[#allocation6 + $0xa0] sm:$0xf]
    %v140 = vld [vmem:[#allocation6 + $0xa4] sm:$0xf]
    %v141 = vld [vmem:[#allocation6 + $0xa8] sm:$0xf]
    %v142 = vld [vmem:[#allocation6 + $0xac] sm:$0xf]
    %v143 = vld [vmem:[#allocation6 + $0xb0] sm:$0xf]
    %v144 = vld [vmem:[#allocation6 + $0xb4] sm:$0xf]
    %v145 = vld [vmem:[#allocation6 + $0xb8] sm:$0xf]
    %v146 = vld [vmem:[#allocation6 + $0xbc] sm:$0xf]
    %v147 = vld [vmem:[#allocation6 + $0xc0] sm:$0xf]
    %v148 = vld [vmem:[#allocation6 + $0xc4] sm:$0xf]
    %v149 = vld [vmem:[#allocation6 + $0xc8] sm:$0xf]
    %v150 = vld [vmem:[#allocation6 + $0xcc] sm:$0xf]
    %v151 = vld [vmem:[#allocation6 + $0xd0] sm:$0xf]
    %v152 = vld [vmem:[#allocation6 + $0xd4] sm:$0xf]
    %v153 = vld [vmem:[#allocation6 + $0xd8] sm:$0xf]
    %v154 = vld [vmem:[#allocation6 + $0xdc] sm:$0xf]
    %v155 = vld [vmem:[#allocation6 + $0xe0] sm:$0xf]
    %v156 = vld [vmem:[#allocation6 + $0xe4] sm:$0xf]
    %v157 = vld [vmem:[#allocation6 + $0xe8] sm:$0xf]
    %v158 = vld [vmem:[#allocation6 + $0xec] sm:$0xf]
    %v159 = vld [vmem:[#allocation6 + $0xf0] sm:$0xf]
    %v160 = vld [vmem:[#allocation6 + $0xf4] sm:$0xf]
    %v161 = vld [vmem:[#allocation6 + $0xf8] sm:$0xf]
    %v162 = vld [vmem:[#allocation6 + $0xfc] sm:$0xf]
    %v163 = vld [vmem:[#allocation6 + $0x100] sm:$0xf]
    %v164 = vld [vmem:[#allocation6 + $0x104] sm:$0xf]
    %v165 = vld [vmem:[#allocation6 + $0x108] sm:$0xf]
    %v166 = vld [vmem:[#allocation6 + $0x10c] sm:$0xf]
    %v167 = vld [vmem:[#allocation6 + $0x110] sm:$0xf]
    %v168 = vld [vmem:[#allocation6 + $0x114] sm:$0xf]
    %v169 = vld [vmem:[#allocation6 + $0x118] sm:$0xf]
    %v170 = vld [vmem:[#allocation6 + $0x11c] sm:$0xf]
    %v171 = vld [vmem:[#allocation6 + $0x120] sm:$0xf]
    %v172 = vld [vmem:[#allocation6 + $0x124] sm:$0xf]
    %v173 = vld [vmem:[#allocation6 + $0x128] sm:$0xf]
    %v174 = vld [vmem:[#allocation6 + $0x12c] sm:$0xf]
    %v175 = vld [vmem:[#allocation6 + $0x130] sm:$0xf]
    %v176 = vld [vmem:[#allocation6 + $0x134] sm:$0xf]
    %v177 = vld [vmem:[#allocation6 + $0x138] sm:$0xf]
    %v178 = vld [vmem:[#allocation6 + $0x13c] sm:$0xf]
    %v179 = vld [vmem:[#allocation6 + $0x140] sm:$0xf]
    %v180 = vld [vmem:[#allocation6 + $0x144] sm:$0xf]
    %v181 = vld [vmem:[#allocation6 + $0x148] sm:$0xf]
    %v182 = vld [vmem:[#allocation6 + $0x14c] sm:$0xf]
    %v183 = vld [vmem:[#allocation6 + $0x150] sm:$0xf]
    %v184 = vld [vmem:[#allocation6 + $0x154] sm:$0xf]
    %v185 = vld [vmem:[#allocation6 + $0x158] sm:$0xf]
    %v186 = vld [vmem:[#allocation6 + $0x15c] sm:$0xf]
    %v187 = vld [vmem:[#allocation6 + $0x160] sm:$0xf]
    %v188 = vld [vmem:[#allocation6 + $0x164] sm:$0xf]
    %v189 = vld [vmem:[#allocation6 + $0x168] sm:$0xf]
    %v190 = vld [vmem:[#allocation6 + $0x16c] sm:$0xf]
    %v191 = vld [vmem:[#allocation6 + $0x170] sm:$0xf]
    %v192 = vld [vmem:[#allocation6 + $0x174] sm:$0xf]
    %v193 = vld [vmem:[#allocation6 + $0x178] sm:$0xf]
    %v194 = vld [vmem:[#allocation6 + $0x17c] sm:$0xf]
    %v195 = vld [vmem:[#allocation6 + $0x180] sm:$0xf]
    %v196 = vld [vmem:[#allocation6 + $0x184] sm:$0xf]
    %v197 = vld [vmem:[#allocation6 + $0x188] sm:$0xf]
    %v198 = vld [vmem:[#allocation6 + $0x18c] sm:$0xf]
    %v199 = vld [vmem:[#allocation6 + $0x190] sm:$0xf]
    %v200 = vld [vmem:[#allocation6 + $0x194] sm:$0xf]
    %v201 = vld [vmem:[#allocation6 + $0x198] sm:$0xf]
    %v202 = vld [vmem:[#allocation6 + $0x19c] sm:$0xf]
    %v203 = vld [vmem:[#allocation6 + $0x1a0] sm:$0xf]
    %v204 = vld [vmem:[#allocation6 + $0x1a4] sm:$0xf]
    %v205 = vld [vmem:[#allocation6 + $0x1a8] sm:$0xf]
    %v206 = vld [vmem:[#allocation6 + $0x1ac] sm:$0xf]
    %v207 = vld [vmem:[#allocation6 + $0x1b0] sm:$0xf]
    %v208 = vld [vmem:[#allocation6 + $0x1b4] sm:$0xf]
    %v209 = vld [vmem:[#allocation6 + $0x1b8] sm:$0xf]
    %v210 = vld [vmem:[#allocation6 + $0x1bc] sm:$0xf]
    %v211 = vld [vmem:[#allocation6 + $0x1c0] sm:$0xf]
    %v212 = vld [vmem:[#allocation6 + $0x1c4] sm:$0xf]
    %v213 = vld [vmem:[#allocation6 + $0x1c8] sm:$0xf]
    %v214 = vld [vmem:[#allocation6 + $0x1cc] sm:$0xf]
    %v215 = vld [vmem:[#allocation6 + $0x1d0] sm:$0xf]
    %v216 = vld [vmem:[#allocation6 + $0x1d4] sm:$0xf]
    %v217 = vld [vmem:[#allocation6 + $0x1d8] sm:$0xf]
    %v218 = vld [vmem:[#allocation6 + $0x1dc] sm:$0xf]
    %v219 = vld [vmem:[#allocation6 + $0x1e0] sm:$0xf]
    %v220 = vld [vmem:[#allocation6 + $0x1e4] sm:$0xf]
    %v221 = vld [vmem:[#allocation6 + $0x1e8] sm:$0xf]
    %v222 = vld [vmem:[#allocation6 + $0x1ec] sm:$0xf]
    %v223 = vld [vmem:[#allocation6 + $0x1f0] sm:$0xf]
    %v224 = vld [vmem:[#allocation6 + $0x1f4] sm:$0xf]
    %v225 = vld [vmem:[#allocation6 + $0x1f8] sm:$0xf]
    %v226 = vld [vmem:[#allocation6 + $0x1fc] sm:$0xf]
    %v227 = vld [vmem:[#allocation6 + $0x200] sm:$0xf]
    %v228 = vld [vmem:[#allocation6 + $0x204] sm:$0xf]
    %v229 = vld [vmem:[#allocation6 + $0x208] sm:$0xf]
    %v230 = vld [vmem:[#allocation6 + $0x20c] sm:$0xf]
    %v231 = vld [vmem:[#allocation6 + $0x210] sm:$0xf]
    %v232 = vld [vmem:[#allocation6 + $0x214] sm:$0xf]
    %v233 = vld [vmem:[#allocation6 + $0x218] sm:$0xf]
    %v234 = vld [vmem:[#allocation6 + $0x21c] sm:$0xf]
    %v235 = vld [vmem:[#allocation6 + $0x220] sm:$0xf]
    %v236 = vld [vmem:[#allocation6 + $0x224] sm:$0xf]
    %v237 = vld [vmem:[#allocation6 + $0x228] sm:$0xf]
    %v238 = vld [vmem:[#allocation6 + $0x22c] sm:$0xf]
    %v239 = vld [vmem:[#allocation6 + $0x230] sm:$0xf]
    %v240 = vld [vmem:[#allocation6 + $0x234] sm:$0xf]
    %v241 = vld [vmem:[#allocation6 + $0x238] sm:$0xf]
    %v242 = vld [vmem:[#allocation6 + $0x23c] sm:$0xf]
    %v243 = vld [vmem:[#allocation6 + $0x240] sm:$0xf]
    %v244 = vld [vmem:[#allocation6 + $0x244] sm:$0xf]
    %v245 = vld [vmem:[#allocation6 + $0x248] sm:$0xf]
    %v246 = vld [vmem:[#allocation6 + $0x24c] sm:$0xf]
    %v247 = vld [vmem:[#allocation6 + $0x250] sm:$0xf]
    %v248 = vld [vmem:[#allocation6 + $0x254] sm:$0xf]
    %v249 = vld [vmem:[#allocation6 + $0x258] sm:$0xf]
    %v250 = vld [vmem:[#allocation6 + $0x25c] sm:$0xf]
    %v251 = vld [vmem:[#allocation6 + $0x260] sm:$0xf]
    %v252 = vld [vmem:[#allocation6 + $0x264] sm:$0xf]
    %v253 = vld [vmem:[#allocation6 + $0x268] sm:$0xf]
    %v254 = vld [vmem:[#allocation6 + $0x26c] sm:$0xf]
    %v255 = vld [vmem:[#allocation6 + $0x270] sm:$0xf]
    %v256 = vld [vmem:[#allocation6 + $0x274] sm:$0xf]
    %v257 = vld [vmem:[#allocation6 + $0x278] sm:$0xf]
    %v258 = vld [vmem:[#allocation6 + $0x27c] sm:$0xf]
    %v259 = vld [vmem:[#allocation6 + $0x280] sm:$0xf]
    %v260 = vld [vmem:[#allocation6 + $0x284] sm:$0xf]
    %v261 = vld [vmem:[#allocation6 + $0x288] sm:$0xf]
    %v262 = vld [vmem:[#allocation6 + $0x28c] sm:$0xf]
    %v263 = vld [vmem:[#allocation6 + $0x290] sm:$0xf]
    %v264 = vld [vmem:[#allocation6 + $0x294] sm:$0xf]
    %v265 = vld [vmem:[#allocation6 + $0x298] sm:$0xf]
    %v266 = vld [vmem:[#allocation6 + $0x29c] sm:$0xf]
    %v267 = vld [vmem:[#allocation6 + $0x2a0] sm:$0xf]
    %v268 = vld [vmem:[#allocation6 + $0x2a4] sm:$0xf]
    %v269 = vld [vmem:[#allocation6 + $0x2a8] sm:$0xf]
    %v270 = vld [vmem:[#allocation6 + $0x2ac] sm:$0xf]
    %v271 = vld [vmem:[#allocation6 + $0x2b0] sm:$0xf]
    %v272 = vld [vmem:[#allocation6 + $0x2b4] sm:$0xf]
    %v273 = vld [vmem:[#allocation6 + $0x2b8] sm:$0xf]
    %v274 = vld [vmem:[#allocation6 + $0x2bc] sm:$0xf]
    %v275 = vld [vmem:[#allocation6 + $0x2c0] sm:$0xf]
    %v276 = vld [vmem:[#allocation6 + $0x2c4] sm:$0xf]
    %v277 = vld [vmem:[#allocation6 + $0x2c8] sm:$0xf]
    %v278 = vld [vmem:[#allocation6 + $0x2cc] sm:$0xf]
    %v279 = vld [vmem:[#allocation6 + $0x2d0] sm:$0xf]
    %v280 = vld [vmem:[#allocation6 + $0x2d4] sm:$0xf]
    %v281 = vld [vmem:[#allocation6 + $0x2d8] sm:$0xf]
    %v282 = vld [vmem:[#allocation6 + $0x2dc] sm:$0xf]
    %v283 = vld [vmem:[#allocation6 + $0x2e0] sm:$0xf]
    %v284 = vld [vmem:[#allocation6 + $0x2e4] sm:$0xf]
    %v285 = vld [vmem:[#allocation6 + $0x2e8] sm:$0xf]
    %v286 = vld [vmem:[#allocation6 + $0x2ec] sm:$0xf]
    %v287 = vld [vmem:[#allocation6 + $0x2f0] sm:$0xf]
    %v288 = vld [vmem:[#allocation6 + $0x2f4] sm:$0xf]
    %v289 = vld [vmem:[#allocation6 + $0x2f8] sm:$0xf]
    %v290 = vld [vmem:[#allocation6 + $0x2fc] sm:$0xf]
    %v291 = vld [vmem:[#allocation6 + $0x300] sm:$0xf]
    %v292 = vld [vmem:[#allocation6 + $0x304] sm:$0xf]
    %v293 = vld [vmem:[#allocation6 + $0x308] sm:$0xf]
    %v294 = vld [vmem:[#allocation6 + $0x30c] sm:$0xf]
    %v295 = vld [vmem:[#allocation6 + $0x310] sm:$0xf]
    %v296 = vld [vmem:[#allocation6 + $0x314] sm:$0xf]
    %v297 = vld [vmem:[#allocation6 + $0x318] sm:$0xf]
    %v298 = vld [vmem:[#allocation6 + $0x31c] sm:$0xf]
    %v299 = vld [vmem:[#allocation6 + $0x320] sm:$0xf]
    %v300 = vld [vmem:[#allocation6 + $0x324] sm:$0xf]
    %v301 = vld [vmem:[#allocation6 + $0x328] sm:$0xf]
    %v302 = vld [vmem:[#allocation6 + $0x32c] sm:$0xf]
    %v303 = vld [vmem:[#allocation6 + $0x330] sm:$0xf]
    %v304 = vld [vmem:[#allocation6 + $0x334] sm:$0xf]
    %v305 = vld [vmem:[#allocation6 + $0x338] sm:$0xf]
    %v306 = vld [vmem:[#allocation6 + $0x33c] sm:$0xf]
    %v307 = vld [vmem:[#allocation6 + $0x340] sm:$0xf]
    %v308 = vld [vmem:[#allocation6 + $0x344] sm:$0xf]
    %v309 = vld [vmem:[#allocation6 + $0x348] sm:$0xf]
    %v310 = vld [vmem:[#allocation6 + $0x34c] sm:$0xf]
    %v311 = vld [vmem:[#allocation6 + $0x350] sm:$0xf]
    %v312 = vld [vmem:[#allocation6 + $0x354] sm:$0xf]
    %v313 = vld [vmem:[#allocation6 + $0x358] sm:$0xf]
    %v314 = vld [vmem:[#allocation6 + $0x35c] sm:$0xf]
    %v315 = vld [vmem:[#allocation6 + $0x360] sm:$0xf]
    %v316 = vld [vmem:[#allocation6 + $0x364] sm:$0xf]
    %v317 = vld [vmem:[#allocation6 + $0x368] sm:$0xf]
    %v318 = vld [vmem:[#allocation6 + $0x36c] sm:$0xf]
    %v319 = vld [vmem:[#allocation6 + $0x370] sm:$0xf]
    %v320 = vld [vmem:[#allocation6 + $0x374] sm:$0xf]
    %v321 = vld [vmem:[#allocation6 + $0x378] sm:$0xf]
    %v322 = vld [vmem:[#allocation6 + $0x37c] sm:$0xf]
    %v323 = vld [vmem:[#allocation6 + $0x380] sm:$0xf]
    %v324 = vld [vmem:[#allocation6 + $0x384] sm:$0xf]
    %v325 = vld [vmem:[#allocation6 + $0x388] sm:$0xf]
    %v326 = vld [vmem:[#allocation6 + $0x38c] sm:$0xf]
    %v327 = vld [vmem:[#allocation6 + $0x390] sm:$0xf]
    %v328 = vld [vmem:[#allocation6 + $0x394] sm:$0xf]
    %v329 = vld [vmem:[#allocation6 + $0x398] sm:$0xf]
    %v330 = vld [vmem:[#allocation6 + $0x39c] sm:$0xf]
    %v331 = vld [vmem:[#allocation6 + $0x3a0] sm:$0xf]
    %v332 = vld [vmem:[#allocation6 + $0x3a4] sm:$0xf]
    %v333 = vld [vmem:[#allocation6 + $0x3a8] sm:$0xf]
    %v334 = vld [vmem:[#allocation6 + $0x3ac] sm:$0xf]
    %v335 = vld [vmem:[#allocation6 + $0x3b0] sm:$0xf]
    %v336 = vld [vmem:[#allocation6 + $0x3b4] sm:$0xf]
    %v337 = vld [vmem:[#allocation6 + $0x3b8] sm:$0xf]
    %v338 = vld [vmem:[#allocation6 + $0x3bc] sm:$0xf]
    %v339 = vld [vmem:[#allocation6 + $0x3c0] sm:$0xf]
    %v340 = vld [vmem:[#allocation6 + $0x3c4] sm:$0xf]
    %v341 = vld [vmem:[#allocation6 + $0x3c8] sm:$0xf]
    %v342 = vld [vmem:[#allocation6 + $0x3cc] sm:$0xf]
    %v343 = vld [vmem:[#allocation6 + $0x3d0] sm:$0xf]
    %v344 = vld [vmem:[#allocation6 + $0x3d4] sm:$0xf]
    %v345 = vld [vmem:[#allocation6 + $0x3d8] sm:$0xf]
    %v346 = vld [vmem:[#allocation6 + $0x3dc] sm:$0xf]
    %v347 = vld [vmem:[#allocation6 + $0x3e0] sm:$0xf]
    %v348 = vld [vmem:[#allocation6 + $0x3e4] sm:$0xf]
    %v349 = vld [vmem:[#allocation6 + $0x3e8] sm:$0xf]
    %v350 = vld [vmem:[#allocation6 + $0x3ec] sm:$0xf]
    %v351 = vld [vmem:[#allocation6 + $0x3f0] sm:$0xf]
    %v352 = vld [vmem:[#allocation6 + $0x3f4] sm:$0xf]
    %v353 = vld [vmem:[#allocation6 + $0x3f8] sm:$0xf]
    %v354 = vld [vmem:[#allocation6 + $0x3fc] sm:$0xf]
    %v355 = vld [vmem:[#allocation6 + $0x400] sm:$0xf]
    %v356 = vld [vmem:[#allocation6 + $0x404] sm:$0xf]
    %v357 = vld [vmem:[#allocation6 + $0x408] sm:$0xf]
    %v358 = vld [vmem:[#allocation6 + $0x40c] sm:$0xf]
    %v359 = vld [vmem:[#allocation6 + $0x410] sm:$0xf]
    %v360 = vld [vmem:[#allocation6 + $0x414] sm:$0xf]
    %v361 = vld [vmem:[#allocation6 + $0x418] sm:$0xf]
    %v362 = vld [vmem:[#allocation6 + $0x41c] sm:$0xf]
    %v363 = vld [vmem:[#allocation6 + $0x420] sm:$0xf]
    %v364 = vld [vmem:[#allocation6 + $0x424] sm:$0xf]
    %v365 = vld [vmem:[#allocation6 + $0x428] sm:$0xf]
    %v366 = vld [vmem:[#allocation6 + $0x42c] sm:$0xf]
    %v367 = vld [vmem:[#allocation6 + $0x430] sm:$0xf]
    %v368 = vld [vmem:[#allocation6 + $0x434] sm:$0xf]
    %v369 = vld [vmem:[#allocation6 + $0x438] sm:$0xf]
    %v370 = vld [vmem:[#allocation6 + $0x43c] sm:$0xf]
    %v371 = vld [vmem:[#allocation6 + $0x440] sm:$0xf]
    %v372 = vld [vmem:[#allocation6 + $0x444] sm:$0xf]
    %v373 = vld [vmem:[#allocation6 + $0x448] sm:$0xf]
    %v374 = vld [vmem:[#allocation6 + $0x44c] sm:$0xf]
    %v375 = vld [vmem:[#allocation6 + $0x450] sm:$0xf]
    %v376 = vld [vmem:[#allocation6 + $0x454] sm:$0xf]
    %v377 = vld [vmem:[#allocation6 + $0x458] sm:$0xf]
    %v378 = vld [vmem:[#allocation6 + $0x45c] sm:$0xf]
    %v379 = vld [vmem:[#allocation6 + $0x460] sm:$0xf]
    %v380 = vld [vmem:[#allocation6 + $0x464] sm:$0xf]
    %v381 = vld [vmem:[#allocation6 + $0x468] sm:$0xf]
    %v382 = vld [vmem:[#allocation6 + $0x46c] sm:$0xf]
    %v383 = vld [vmem:[#allocation6 + $0x470] sm:$0xf]
    %v384 = vld [vmem:[#allocation6 + $0x474] sm:$0xf]
    %v385 = vld [vmem:[#allocation6 + $0x478] sm:$0xf]
    %v386 = vld [vmem:[#allocation6 + $0x47c] sm:$0xf]
    %v387 = vld [vmem:[#allocation6 + $0x480] sm:$0xf]
    %v388 = vld [vmem:[#allocation6 + $0x484] sm:$0xf]
    %v389 = vld [vmem:[#allocation6 + $0x488] sm:$0xf]
    %v390 = vld [vmem:[#allocation6 + $0x48c] sm:$0xf]
    %v391 = vld [vmem:[#allocation6 + $0x490] sm:$0xf]
    %v392 = vld [vmem:[#allocation6 + $0x494] sm:$0xf]
    %v393 = vld [vmem:[#allocation6 + $0x498] sm:$0xf]
    %v394 = vld [vmem:[#allocation6 + $0x49c] sm:$0xf]
    %v395 = vld [vmem:[#allocation6 + $0x4a0] sm:$0xf]
    %v396 = vld [vmem:[#allocation6 + $0x4a4] sm:$0xf]
    %v397 = vld [vmem:[#allocation6 + $0x4a8] sm:$0xf]
    %v398 = vld [vmem:[#allocation6 + $0x4ac] sm:$0xf]
    %v399 = vld [vmem:[#allocation6 + $0x4b0] sm:$0xf]
    %v400 = vld [vmem:[#allocation6 + $0x4b4] sm:$0xf]
    %v401 = vld [vmem:[#allocation6 + $0x4b8] sm:$0xf]
    %v402 = vld [vmem:[#allocation6 + $0x4bc] sm:$0xf]
    %v403 = vld [vmem:[#allocation6 + $0x4c0] sm:$0xf]
    %v404 = vld [vmem:[#allocation6 + $0x4c4] sm:$0xf]
    %v405 = vld [vmem:[#allocation6 + $0x4c8] sm:$0xf]
    %v406 = vld [vmem:[#allocation6 + $0x4cc] sm:$0xf]
    %v407 = vld [vmem:[#allocation6 + $0x4d0] sm:$0xf]
    %v408 = vld [vmem:[#allocation6 + $0x4d4] sm:$0xf]
    %v409 = vld [vmem:[#allocation6 + $0x4d8] sm:$0xf]
    %v410 = vld [vmem:[#allocation6 + $0x4dc] sm:$0xf]
    %v411 = vld [vmem:[#allocation6 + $0x4e0] sm:$0xf]
    %v412 = vld [vmem:[#allocation6 + $0x4e4] sm:$0xf]
    %v413 = vld [vmem:[#allocation6 + $0x4e8] sm:$0xf]
    %v414 = vld [vmem:[#allocation6 + $0x4ec] sm:$0xf]
    %v415 = vld [vmem:[#allocation6 + $0x4f0] sm:$0xf]
    %v416 = vld [vmem:[#allocation6 + $0x4f4] sm:$0xf]
    %v417 = vld [vmem:[#allocation6 + $0x4f8] sm:$0xf]
    %v418 = vld [vmem:[#allocation6 + $0x4fc] sm:$0xf]
    %v419 = vld [vmem:[#allocation6 + $0x500] sm:$0xf]
    %v420 = vld [vmem:[#allocation6 + $0x504] sm:$0xf]
    %v421 = vld [vmem:[#allocation6 + $0x508] sm:$0xf]
    %v422 = vld [vmem:[#allocation6 + $0x50c] sm:$0xf]
    %v423 = vld [vmem:[#allocation6 + $0x510] sm:$0xf]
    %v424 = vld [vmem:[#allocation6 + $0x514] sm:$0xf]
    %v425 = vld [vmem:[#allocation6 + $0x518] sm:$0xf]
    %v426 = vld [vmem:[#allocation6 + $0x51c] sm:$0xf]
    %v427 = vld [vmem:[#allocation6 + $0x520] sm:$0xf]
    %v428 = vld [vmem:[#allocation6 + $0x524] sm:$0xf]
    %v429 = vld [vmem:[#allocation6 + $0x528] sm:$0xf]
    %v430 = vld [vmem:[#allocation6 + $0x52c] sm:$0xf]
    %v431 = vld [vmem:[#allocation6 + $0x530] sm:$0xf]
    %v432 = vld [vmem:[#allocation6 + $0x534] sm:$0xf]
    %v433 = vld [vmem:[#allocation6 + $0x538] sm:$0xf]
    %v434 = vld [vmem:[#allocation6 + $0x53c] sm:$0xf]
    %v435 = vld [vmem:[#allocation6 + $0x540] sm:$0xf]
    %v436 = vld [vmem:[#allocation6 + $0x544] sm:$0xf]
    %v437 = vld [vmem:[#allocation6 + $0x548] sm:$0xf]
    %v438 = vld [vmem:[#allocation6 + $0x54c] sm:$0xf]
    %v439 = vld [vmem:[#allocation6 + $0x550] sm:$0xf]
    %v440 = vld [vmem:[#allocation6 + $0x554] sm:$0xf]
    %v441 = vld [vmem:[#allocation6 + $0x558] sm:$0xf]
    %v442 = vld [vmem:[#allocation6 + $0x55c] sm:$0xf]
    %v443 = vld [vmem:[#allocation6 + $0x560] sm:$0xf]
    %v444 = vld [vmem:[#allocation6 + $0x564] sm:$0xf]
    %v445 = vld [vmem:[#allocation6 + $0x568] sm:$0xf]
    %v446 = vld [vmem:[#allocation6 + $0x56c] sm:$0xf]
    %v447 = vld [vmem:[#allocation6 + $0x570] sm:$0xf]
    %v448 = vld [vmem:[#allocation6 + $0x574] sm:$0xf]
    %v449 = vld [vmem:[#allocation6 + $0x578] sm:$0xf]
    %v450 = vld [vmem:[#allocation6 + $0x57c] sm:$0xf]
    %v451 = vld [vmem:[#allocation6 + $0x580] sm:$0xf]
    %v452 = vld [vmem:[#allocation6 + $0x584] sm:$0xf]
    %v453 = vld [vmem:[#allocation6 + $0x588] sm:$0xf]
    %v454 = vld [vmem:[#allocation6 + $0x58c] sm:$0xf]
    %v455 = vld [vmem:[#allocation6 + $0x590] sm:$0xf]
    %v456 = vld [vmem:[#allocation6 + $0x594] sm:$0xf]
    %v457 = vld [vmem:[#allocation6 + $0x598] sm:$0xf]
    %v458 = vld [vmem:[#allocation6 + $0x59c] sm:$0xf]
    %v459 = vld [vmem:[#allocation6 + $0x5a0] sm:$0xf]
    %v460 = vld [vmem:[#allocation6 + $0x5a4] sm:$0xf]
    %v461 = vld [vmem:[#allocation6 + $0x5a8] sm:$0xf]
    %v462 = vld [vmem:[#allocation6 + $0x5ac] sm:$0xf]
    %v463 = vld [vmem:[#allocation6 + $0x5b0] sm:$0xf]
    %v464 = vld [vmem:[#allocation6 + $0x5b4] sm:$0xf]
    %v465 = vld [vmem:[#allocation6 + $0x5b8] sm:$0xf]
    %v466 = vld [vmem:[#allocation6 + $0x5bc] sm:$0xf]
    %v467 = vld [vmem:[#allocation6 + $0x5c0] sm:$0xf]
    %v468 = vld [vmem:[#allocation6 + $0x5c4] sm:$0xf]
    %v469 = vld [vmem:[#allocation6 + $0x5c8] sm:$0xf]
    %v470 = vld [vmem:[#allocation6 + $0x5cc] sm:$0xf]
    %v471 = vld [vmem:[#allocation6 + $0x5d0] sm:$0xf]
    %v472 = vld [vmem:[#allocation6 + $0x5d4] sm:$0xf]
    %v473 = vld [vmem:[#allocation6 + $0x5d8] sm:$0xf]
    %v474 = vld [vmem:[#allocation6 + $0x5dc] sm:$0xf]
    %v475 = vld [vmem:[#allocation6 + $0x5e0] sm:$0xf]
    %v476 = vld [vmem:[#allocation6 + $0x5e4] sm:$0xf]
    %v477 = vld [vmem:[#allocation6 + $0x5e8] sm:$0xf]
    %v478 = vld [vmem:[#allocation6 + $0x5ec] sm:$0xf]
    %v479 = vld [vmem:[#allocation6 + $0x5f0] sm:$0xf]
    %v480 = vld [vmem:[#allocation6 + $0x5f4] sm:$0xf]
    %v481 = vld [vmem:[#allocation6 + $0x5f8] sm:$0xf]
    %v482 = vld [vmem:[#allocation6 + $0x5fc] sm:$0xf]
    %v495 = vunpack.c.l.b16 %v87
    %v496 = vunpack.c.h.b16 %v87
    %v497 = vunpack.c.l.b16 %v88
    %v498 = vunpack.c.h.b16 %v88
    %v499 = vunpack.c.l.b16 %v89
    %v500 = vunpack.c.h.b16 %v89
    %v501 = vunpack.c.l.b16 %v90
    %v502 = vunpack.c.h.b16 %v90
    %v503 = vunpack.c.l.b16 %v91
    %v504 = vunpack.c.h.b16 %v91
    %v505 = vunpack.c.l.b16 %v92
    %v506 = vunpack.c.h.b16 %v92
    %v507 = vunpack.c.l.b16 %v93
    %v508 = vunpack.c.h.b16 %v93
    %v509 = vunpack.c.l.b16 %v94
    %v510 = vunpack.c.h.b16 %v94
    %v511 = vunpack.c.l.b16 %v95
    %v512 = vunpack.c.h.b16 %v95
    %v513 = vunpack.c.l.b16 %v96
    %v514 = vunpack.c.h.b16 %v96
    %v515 = vunpack.c.l.b16 %v97
    %v516 = vunpack.c.h.b16 %v97
    %v517 = vunpack.c.l.b16 %v98
    %v518 = vunpack.c.h.b16 %v98
    %v519 = vpack.c.b16 %v495, %v495
    %v520 = vpack.c.b16 %v496, %v496
    %v521 = vpack.c.b16 %v497, %v497
    %v522 = vpack.c.b16 %v498, %v498
    %v523 = vpack.c.b16 %v499, %v499
    %v524 = vpack.c.b16 %v500, %v500
    %v525 = vpack.c.b16 %v501, %v501
    %v526 = vpack.c.b16 %v502, %v502
    %v527 = vpack.c.b16 %v503, %v503
    %v528 = vpack.c.b16 %v504, %v504
    %v529 = vpack.c.b16 %v505, %v505
    %v530 = vpack.c.b16 %v506, %v506
    %v531 = vpack.c.b16 %v507, %v507
    %v532 = vpack.c.b16 %v508, %v508
    %v533 = vpack.c.b16 %v509, %v509
    %v534 = vpack.c.b16 %v510, %v510
    %v535 = vpack.c.b16 %v511, %v511
    %v536 = vpack.c.b16 %v512, %v512
    %v537 = vpack.c.b16 %v513, %v513
    %v538 = vpack.c.b16 %v514, %v514
    %v539 = vpack.c.b16 %v515, %v515
    %v540 = vpack.c.b16 %v516, %v516
    %v541 = vpack.c.b16 %v517, %v517
    %v542 = vpack.c.b16 %v518, %v518
    %v951 = vunpack.c.l.b16 %v99
    %v952 = vunpack.c.l.b16 %v100
    %v953 = vunpack.c.l.b16 %v101
    %v954 = vunpack.c.l.b16 %v102
    %v955 = vunpack.c.l.b16 %v103
    %v956 = vunpack.c.l.b16 %v104
    %v957 = vunpack.c.l.b16 %v105
    %v958 = vunpack.c.l.b16 %v106
    %v959 = vunpack.c.l.b16 %v107
    %v960 = vunpack.c.l.b16 %v108
    %v961 = vunpack.c.l.b16 %v109
    %v962 = vunpack.c.l.b16 %v110
    %v963 = vunpack.c.l.b16 %v111
    %v964 = vunpack.c.l.b16 %v112
    %v965 = vunpack.c.l.b16 %v113
    %v966 = vunpack.c.l.b16 %v114
    %v967 = vunpack.c.l.b16 %v115
    %v968 = vunpack.c.l.b16 %v116
    %v969 = vunpack.c.l.b16 %v117
    %v970 = vunpack.c.l.b16 %v118
    %v971 = vunpack.c.l.b16 %v119
    %v972 = vunpack.c.l.b16 %v120
    %v973 = vunpack.c.l.b16 %v121
    %v974 = vunpack.c.l.b16 %v122
    %v975 = vunpack.c.l.b16 %v123
    %v976 = vunpack.c.l.b16 %v124
    %v977 = vunpack.c.l.b16 %v125
    %v978 = vunpack.c.l.b16 %v126
    %v979 = vunpack.c.l.b16 %v127
    %v980 = vunpack.c.l.b16 %v128
    %v981 = vunpack.c.l.b16 %v129
    %v982 = vunpack.c.l.b16 %v130
    %v983 = vunpack.c.l.b16 %v131
    %v984 = vunpack.c.l.b16 %v132
    %v985 = vunpack.c.l.b16 %v133
    %v986 = vunpack.c.l.b16 %v134
    %v987 = vunpack.c.l.b16 %v135
    %v988 = vunpack.c.l.b16 %v136
    %v989 = vunpack.c.l.b16 %v137
    %v990 = vunpack.c.l.b16 %v138
    %v991 = vunpack.c.l.b16 %v139
    %v992 = vunpack.c.l.b16 %v140
    %v993 = vunpack.c.l.b16 %v141
    %v994 = vunpack.c.l.b16 %v142
    %v995 = vunpack.c.l.b16 %v143
    %v996 = vunpack.c.l.b16 %v144
    %v997 = vunpack.c.l.b16 %v145
    %v998 = vunpack.c.l.b16 %v146
    %v999 = vunpack.c.l.b16 %v147
    %v1000 = vunpack.c.l.b16 %v148
    %v1001 = vunpack.c.l.b16 %v149
    %v1002 = vunpack.c.l.b16 %v150
    %v1003 = vunpack.c.l.b16 %v151
    %v1004 = vunpack.c.l.b16 %v152
    %v1005 = vunpack.c.l.b16 %v153
    %v1006 = vunpack.c.l.b16 %v154
    %v1007 = vunpack.c.l.b16 %v155
    %v1008 = vunpack.c.l.b16 %v156
    %v1009 = vunpack.c.l.b16 %v157
    %v1010 = vunpack.c.l.b16 %v158
    %v1011 = vunpack.c.l.b16 %v159
    %v1012 = vunpack.c.l.b16 %v160
    %v1013 = vunpack.c.l.b16 %v161
    %v1014 = vunpack.c.l.b16 %v162
    %v1015 = vunpack.c.l.b16 %v163
    %v1016 = vunpack.c.l.b16 %v164
    %v1017 = vunpack.c.l.b16 %v165
    %v1018 = vunpack.c.l.b16 %v166
    %v1019 = vunpack.c.l.b16 %v167
    %v1020 = vunpack.c.l.b16 %v168
    %v1021 = vunpack.c.l.b16 %v169
    %v1022 = vunpack.c.l.b16 %v170
    %v1023 = vunpack.c.l.b16 %v171
    %v1024 = vunpack.c.l.b16 %v172
    %v1025 = vunpack.c.l.b16 %v173
    %v1026 = vunpack.c.l.b16 %v174
    %v1027 = vunpack.c.l.b16 %v175
    %v1028 = vunpack.c.l.b16 %v176
    %v1029 = vunpack.c.l.b16 %v177
    %v1030 = vunpack.c.l.b16 %v178
    %v1031 = vunpack.c.l.b16 %v179
    %v1032 = vunpack.c.l.b16 %v180
    %v1033 = vunpack.c.l.b16 %v181
    %v1034 = vunpack.c.l.b16 %v182
    %v1035 = vunpack.c.l.b16 %v183
    %v1036 = vunpack.c.l.b16 %v184
    %v1037 = vunpack.c.l.b16 %v185
    %v1038 = vunpack.c.l.b16 %v186
    %v1039 = vunpack.c.l.b16 %v187
    %v1040 = vunpack.c.l.b16 %v188
    %v1041 = vunpack.c.l.b16 %v189
    %v1042 = vunpack.c.l.b16 %v190
    %v1043 = vunpack.c.l.b16 %v191
    %v1044 = vunpack.c.l.b16 %v192
    %v1045 = vunpack.c.l.b16 %v193
    %v1046 = vunpack.c.l.b16 %v194
    %v1047 = vunpack.c.l.b16 %v195
    %v1048 = vunpack.c.l.b16 %v196
    %v1049 = vunpack.c.l.b16 %v197
    %v1050 = vunpack.c.l.b16 %v198
    %v1051 = vunpack.c.l.b16 %v199
    %v1052 = vunpack.c.l.b16 %v200
    %v1053 = vunpack.c.l.b16 %v201
    %v1054 = vunpack.c.l.b16 %v202
    %v1055 = vunpack.c.l.b16 %v203
    %v1056 = vunpack.c.l.b16 %v204
    %v1057 = vunpack.c.l.b16 %v205
    %v1058 = vunpack.c.l.b16 %v206
    %v1059 = vunpack.c.l.b16 %v207
    %v1060 = vunpack.c.l.b16 %v208
    %v1061 = vunpack.c.l.b16 %v209
    %v1062 = vunpack.c.l.b16 %v210
    %v1063 = vunpack.c.l.b16 %v211
    %v1064 = vunpack.c.l.b16 %v212
    %v1065 = vunpack.c.l.b16 %v213
    %v1066 = vunpack.c.l.b16 %v214
    %v1067 = vunpack.c.l.b16 %v215
    %v1068 = vunpack.c.l.b16 %v216
    %v1069 = vunpack.c.l.b16 %v217
    %v1070 = vunpack.c.l.b16 %v218
    %v1071 = vunpack.c.l.b16 %v219
    %v1072 = vunpack.c.l.b16 %v220
    %v1073 = vunpack.c.l.b16 %v221
    %v1074 = vunpack.c.l.b16 %v222
    %v1075 = vunpack.c.l.b16 %v223
    %v1076 = vunpack.c.l.b16 %v224
    %v1077 = vunpack.c.l.b16 %v225
    %v1078 = vunpack.c.l.b16 %v226
    %v1079 = vunpack.c.l.b16 %v227
    %v1080 = vunpack.c.l.b16 %v228
    %v1081 = vunpack.c.l.b16 %v229
    %v1082 = vunpack.c.l.b16 %v230
    %v1083 = vunpack.c.l.b16 %v231
    %v1084 = vunpack.c.l.b16 %v232
    %v1085 = vunpack.c.l.b16 %v233
    %v1086 = vunpack.c.l.b16 %v234
    %v1087 = vunpack.c.l.b16 %v235
    %v1088 = vunpack.c.l.b16 %v236
    %v1089 = vunpack.c.l.b16 %v237
    %v1090 = vunpack.c.l.b16 %v238
    %v1091 = vunpack.c.l.b16 %v239
    %v1092 = vunpack.c.l.b16 %v240
    %v1093 = vunpack.c.l.b16 %v241
    %v1094 = vunpack.c.l.b16 %v242
    %v1095 = vunpack.c.l.b16 %v243
    %v1096 = vunpack.c.l.b16 %v244
    %v1097 = vunpack.c.l.b16 %v245
    %v1098 = vunpack.c.l.b16 %v246
    %v1099 = vunpack.c.l.b16 %v247
    %v1100 = vunpack.c.l.b16 %v248
    %v1101 = vunpack.c.l.b16 %v249
    %v1102 = vunpack.c.l.b16 %v250
    %v1103 = vunpack.c.l.b16 %v251
    %v1104 = vunpack.c.l.b16 %v252
    %v1105 = vunpack.c.l.b16 %v253
    %v1106 = vunpack.c.l.b16 %v254
    %v1107 = vunpack.c.l.b16 %v255
    %v1108 = vunpack.c.l.b16 %v256
    %v1109 = vunpack.c.l.b16 %v257
    %v1110 = vunpack.c.l.b16 %v258
    %v1111 = vunpack.c.l.b16 %v259
    %v1112 = vunpack.c.l.b16 %v260
    %v1113 = vunpack.c.l.b16 %v261
    %v1114 = vunpack.c.l.b16 %v262
    %v1115 = vunpack.c.l.b16 %v263
    %v1116 = vunpack.c.l.b16 %v264
    %v1117 = vunpack.c.l.b16 %v265
    %v1118 = vunpack.c.l.b16 %v266
    %v1119 = vunpack.c.l.b16 %v267
    %v1120 = vunpack.c.l.b16 %v268
    %v1121 = vunpack.c.l.b16 %v269
    %v1122 = vunpack.c.l.b16 %v270
    %v1123 = vunpack.c.l.b16 %v271
    %v1124 = vunpack.c.l.b16 %v272
    %v1125 = vunpack.c.l.b16 %v273
    %v1126 = vunpack.c.l.b16 %v274
    %v1127 = vunpack.c.l.b16 %v275
    %v1128 = vunpack.c.l.b16 %v276
    %v1129 = vunpack.c.l.b16 %v277
    %v1130 = vunpack.c.l.b16 %v278
    %v1131 = vunpack.c.l.b16 %v279
    %v1132 = vunpack.c.l.b16 %v280
    %v1133 = vunpack.c.l.b16 %v281
    %v1134 = vunpack.c.l.b16 %v282
    %v1135 = vunpack.c.l.b16 %v283
    %v1136 = vunpack.c.l.b16 %v284
    %v1137 = vunpack.c.l.b16 %v285
    %v1138 = vunpack.c.l.b16 %v286
    %v1139 = vunpack.c.l.b16 %v287
    %v1140 = vunpack.c.l.b16 %v288
    %v1141 = vunpack.c.l.b16 %v289
    %v1142 = vunpack.c.l.b16 %v290
    %v1143 = vunpack.c.l.b16 %v291
    %v1144 = vunpack.c.l.b16 %v292
    %v1145 = vunpack.c.l.b16 %v293
    %v1146 = vunpack.c.l.b16 %v294
    %v1147 = vunpack.c.l.b16 %v295
    %v1148 = vunpack.c.l.b16 %v296
    %v1149 = vunpack.c.l.b16 %v297
    %v1150 = vunpack.c.l.b16 %v298
    %v1151 = vunpack.c.l.b16 %v299
    %v1152 = vunpack.c.l.b16 %v300
    %v1153 = vunpack.c.l.b16 %v301
    %v1154 = vunpack.c.l.b16 %v302
    %v1155 = vunpack.c.l.b16 %v303
    %v1156 = vunpack.c.l.b16 %v304
    %v1157 = vunpack.c.l.b16 %v305
    %v1158 = vunpack.c.l.b16 %v306
    %v1159 = vunpack.c.l.b16 %v307
    %v1160 = vunpack.c.l.b16 %v308
    %v1161 = vunpack.c.l.b16 %v309
    %v1162 = vunpack.c.l.b16 %v310
    %v1163 = vunpack.c.l.b16 %v311
    %v1164 = vunpack.c.l.b16 %v312
    %v1165 = vunpack.c.l.b16 %v313
    %v1166 = vunpack.c.l.b16 %v314
    %v1167 = vunpack.c.l.b16 %v315
    %v1168 = vunpack.c.l.b16 %v316
    %v1169 = vunpack.c.l.b16 %v317
    %v1170 = vunpack.c.l.b16 %v318
    %v1171 = vunpack.c.l.b16 %v319
    %v1172 = vunpack.c.l.b16 %v320
    %v1173 = vunpack.c.l.b16 %v321
    %v1174 = vunpack.c.l.b16 %v322
    %v1175 = vunpack.c.l.b16 %v323
    %v1176 = vunpack.c.l.b16 %v324
    %v1177 = vunpack.c.l.b16 %v325
    %v1178 = vunpack.c.l.b16 %v326
    %v1179 = vunpack.c.l.b16 %v327
    %v1180 = vunpack.c.l.b16 %v328
    %v1181 = vunpack.c.l.b16 %v329
    %v1182 = vunpack.c.l.b16 %v330
    %v1183 = vunpack.c.l.b16 %v331
    %v1184 = vunpack.c.l.b16 %v332
    %v1185 = vunpack.c.l.b16 %v333
    %v1186 = vunpack.c.l.b16 %v334
    %v1187 = vunpack.c.l.b16 %v335
    %v1188 = vunpack.c.l.b16 %v336
    %v1189 = vunpack.c.l.b16 %v337
    %v1190 = vunpack.c.l.b16 %v338
    %v1191 = vunpack.c.l.b16 %v339
    %v1192 = vunpack.c.l.b16 %v340
    %v1193 = vunpack.c.l.b16 %v341
    %v1194 = vunpack.c.l.b16 %v342
    %v1195 = vunpack.c.l.b16 %v343
    %v1196 = vunpack.c.l.b16 %v344
    %v1197 = vunpack.c.l.b16 %v345
    %v1198 = vunpack.c.l.b16 %v346
    %v1199 = vunpack.c.l.b16 %v347
    %v1200 = vunpack.c.l.b16 %v348
    %v1201 = vunpack.c.l.b16 %v349
    %v1202 = vunpack.c.l.b16 %v350
    %v1203 = vunpack.c.l.b16 %v351
    %v1204 = vunpack.c.l.b16 %v352
    %v1205 = vunpack.c.l.b16 %v353
    %v1206 = vunpack.c.l.b16 %v354
    %v1207 = vunpack.c.l.b16 %v355
    %v1208 = vunpack.c.l.b16 %v356
    %v1209 = vunpack.c.l.b16 %v357
    %v1210 = vunpack.c.l.b16 %v358
    %v1211 = vunpack.c.l.b16 %v359
    %v1212 = vunpack.c.l.b16 %v360
    %v1213 = vunpack.c.l.b16 %v361
    %v1214 = vunpack.c.l.b16 %v362
    %v1215 = vunpack.c.l.b16 %v363
    %v1216 = vunpack.c.l.b16 %v364
    %v1217 = vunpack.c.l.b16 %v365
    %v1218 = vunpack.c.l.b16 %v366
    %v1219 = vunpack.c.l.b16 %v367
    %v1220 = vunpack.c.l.b16 %v368
    %v1221 = vunpack.c.l.b16 %v369
    %v1222 = vunpack.c.l.b16 %v370
    %v1223 = vunpack.c.l.b16 %v371
    %v1224 = vunpack.c.l.b16 %v372
    %v1225 = vunpack.c.l.b16 %v373
    %v1226 = vunpack.c.l.b16 %v374
    %v1227 = vunpack.c.l.b16 %v375
    %v1228 = vunpack.c.l.b16 %v376
    %v1229 = vunpack.c.l.b16 %v377
    %v1230 = vunpack.c.l.b16 %v378
    %v1231 = vunpack.c.l.b16 %v379
    %v1232 = vunpack.c.l.b16 %v380
    %v1233 = vunpack.c.l.b16 %v381
    %v1234 = vunpack.c.l.b16 %v382
    %v1235 = vunpack.c.l.b16 %v383
    %v1236 = vunpack.c.l.b16 %v384
    %v1237 = vunpack.c.l.b16 %v385
    %v1238 = vunpack.c.l.b16 %v386
    %v1239 = vunpack.c.l.b16 %v387
    %v1240 = vunpack.c.l.b16 %v388
    %v1241 = vunpack.c.l.b16 %v389
    %v1242 = vunpack.c.l.b16 %v390
    %v1243 = vunpack.c.l.b16 %v391
    %v1244 = vunpack.c.l.b16 %v392
    %v1245 = vunpack.c.l.b16 %v393
    %v1246 = vunpack.c.l.b16 %v394
    %v1247 = vunpack.c.l.b16 %v395
    %v1248 = vunpack.c.l.b16 %v396
    %v1249 = vunpack.c.l.b16 %v397
    %v1250 = vunpack.c.l.b16 %v398
    %v1251 = vunpack.c.l.b16 %v399
    %v1252 = vunpack.c.l.b16 %v400
    %v1253 = vunpack.c.l.b16 %v401
    %v1254 = vunpack.c.l.b16 %v402
    %v1255 = vunpack.c.l.b16 %v403
    %v1256 = vunpack.c.l.b16 %v404
    %v1257 = vunpack.c.l.b16 %v405
    %v1258 = vunpack.c.l.b16 %v406
    %v1259 = vunpack.c.l.b16 %v407
    %v1260 = vunpack.c.l.b16 %v408
    %v1261 = vunpack.c.l.b16 %v409
    %v1262 = vunpack.c.l.b16 %v410
    %v1263 = vunpack.c.l.b16 %v411
    %v1264 = vunpack.c.l.b16 %v412
    %v1265 = vunpack.c.l.b16 %v413
    %v1266 = vunpack.c.l.b16 %v414
    %v1267 = vunpack.c.l.b16 %v415
    %v1268 = vunpack.c.l.b16 %v416
    %v1269 = vunpack.c.l.b16 %v417
    %v1270 = vunpack.c.l.b16 %v418
    %v1271 = vunpack.c.l.b16 %v419
    %v1272 = vunpack.c.l.b16 %v420
    %v1273 = vunpack.c.l.b16 %v421
    %v1274 = vunpack.c.l.b16 %v422
    %v1275 = vunpack.c.l.b16 %v423
    %v1276 = vunpack.c.l.b16 %v424
    %v1277 = vunpack.c.l.b16 %v425
    %v1278 = vunpack.c.l.b16 %v426
    %v1279 = vunpack.c.l.b16 %v427
    %v1280 = vunpack.c.l.b16 %v428
    %v1281 = vunpack.c.l.b16 %v429
    %v1282 = vunpack.c.l.b16 %v430
    %v1283 = vunpack.c.l.b16 %v431
    %v1284 = vunpack.c.l.b16 %v432
    %v1285 = vunpack.c.l.b16 %v433
    %v1286 = vunpack.c.l.b16 %v434
    %v1287 = vunpack.c.l.b16 %v435
    %v1288 = vunpack.c.l.b16 %v436
    %v1289 = vunpack.c.l.b16 %v437
    %v1290 = vunpack.c.l.b16 %v438
    %v1291 = vunpack.c.l.b16 %v439
    %v1292 = vunpack.c.l.b16 %v440
    %v1293 = vunpack.c.l.b16 %v441
    %v1294 = vunpack.c.l.b16 %v442
    %v1295 = vunpack.c.l.b16 %v443
    %v1296 = vunpack.c.l.b16 %v444
    %v1297 = vunpack.c.l.b16 %v445
    %v1298 = vunpack.c.l.b16 %v446
    %v1299 = vunpack.c.l.b16 %v447
    %v1300 = vunpack.c.l.b16 %v448
    %v1301 = vunpack.c.l.b16 %v449
    %v1302 = vunpack.c.l.b16 %v450
    %v1303 = vunpack.c.l.b16 %v451
    %v1304 = vunpack.c.l.b16 %v452
    %v1305 = vunpack.c.l.b16 %v453
    %v1306 = vunpack.c.l.b16 %v454
    %v1307 = vunpack.c.l.b16 %v455
    %v1308 = vunpack.c.l.b16 %v456
    %v1309 = vunpack.c.l.b16 %v457
    %v1310 = vunpack.c.l.b16 %v458
    %v1311 = vunpack.c.l.b16 %v459
    %v1312 = vunpack.c.l.b16 %v460
    %v1313 = vunpack.c.l.b16 %v461
    %v1314 = vunpack.c.l.b16 %v462
    %v1315 = vunpack.c.l.b16 %v463
    %v1316 = vunpack.c.l.b16 %v464
    %v1317 = vunpack.c.l.b16 %v465
    %v1318 = vunpack.c.l.b16 %v466
    %v1319 = vunpack.c.l.b16 %v467
    %v1320 = vunpack.c.l.b16 %v468
    %v1321 = vunpack.c.l.b16 %v469
    %v1322 = vunpack.c.l.b16 %v470
    %v1323 = vunpack.c.l.b16 %v471
    %v1324 = vunpack.c.l.b16 %v472
    %v1325 = vunpack.c.l.b16 %v473
    %v1326 = vunpack.c.l.b16 %v474
    %v1327 = vunpack.c.l.b16 %v475
    %v1328 = vunpack.c.l.b16 %v476
    %v1329 = vunpack.c.l.b16 %v477
    %v1330 = vunpack.c.l.b16 %v478
    %v1331 = vunpack.c.l.b16 %v479
    %v1332 = vunpack.c.l.b16 %v480
    %v1333 = vunpack.c.l.b16 %v481
    %v1334 = vunpack.c.l.b16 %v482
    %v1335 = vpack.c.b16 %v952, %v951
    %v1336 = vpack.c.b16 %v954, %v953
    %v1337 = vpack.c.b16 %v956, %v955
    %v1338 = vpack.c.b16 %v958, %v957
    %v1339 = vpack.c.b16 %v960, %v959
    %v1340 = vpack.c.b16 %v962, %v961
    %v1341 = vpack.c.b16 %v964, %v963
    %v1342 = vpack.c.b16 %v966, %v965
    %v1343 = vpack.c.b16 %v968, %v967
    %v1344 = vpack.c.b16 %v970, %v969
    %v1345 = vpack.c.b16 %v972, %v971
    %v1346 = vpack.c.b16 %v974, %v973
    %v1347 = vpack.c.b16 %v976, %v975
    %v1348 = vpack.c.b16 %v978, %v977
    %v1349 = vpack.c.b16 %v980, %v979
    %v1350 = vpack.c.b16 %v982, %v981
    %v1351 = vpack.c.b16 %v984, %v983
    %v1352 = vpack.c.b16 %v986, %v985
    %v1353 = vpack.c.b16 %v988, %v987
    %v1354 = vpack.c.b16 %v990, %v989
    %v1355 = vpack.c.b16 %v992, %v991
    %v1356 = vpack.c.b16 %v994, %v993
    %v1357 = vpack.c.b16 %v996, %v995
    %v1358 = vpack.c.b16 %v998, %v997
    %v1359 = vpack.c.b16 %v1000, %v999
    %v1360 = vpack.c.b16 %v1002, %v1001
    %v1361 = vpack.c.b16 %v1004, %v1003
    %v1362 = vpack.c.b16 %v1006, %v1005
    %v1363 = vpack.c.b16 %v1008, %v1007
    %v1364 = vpack.c.b16 %v1010, %v1009
    %v1365 = vpack.c.b16 %v1012, %v1011
    %v1366 = vpack.c.b16 %v1014, %v1013
    %v1367 = vpack.c.b16 %v1016, %v1015
    %v1368 = vpack.c.b16 %v1018, %v1017
    %v1369 = vpack.c.b16 %v1020, %v1019
    %v1370 = vpack.c.b16 %v1022, %v1021
    %v1371 = vpack.c.b16 %v1024, %v1023
    %v1372 = vpack.c.b16 %v1026, %v1025
    %v1373 = vpack.c.b16 %v1028, %v1027
    %v1374 = vpack.c.b16 %v1030, %v1029
    %v1375 = vpack.c.b16 %v1032, %v1031
    %v1376 = vpack.c.b16 %v1034, %v1033
    %v1377 = vpack.c.b16 %v1036, %v1035
    %v1378 = vpack.c.b16 %v1038, %v1037
    %v1379 = vpack.c.b16 %v1040, %v1039
    %v1380 = vpack.c.b16 %v1042, %v1041
    %v1381 = vpack.c.b16 %v1044, %v1043
    %v1382 = vpack.c.b16 %v1046, %v1045
    %v1383 = vpack.c.b16 %v1048, %v1047
    %v1384 = vpack.c.b16 %v1050, %v1049
    %v1385 = vpack.c.b16 %v1052, %v1051
    %v1386 = vpack.c.b16 %v1054, %v1053
    %v1387 = vpack.c.b16 %v1056, %v1055
    %v1388 = vpack.c.b16 %v1058, %v1057
    %v1389 = vpack.c.b16 %v1060, %v1059
    %v1390 = vpack.c.b16 %v1062, %v1061
    %v1391 = vpack.c.b16 %v1064, %v1063
    %v1392 = vpack.c.b16 %v1066, %v1065
    %v1393 = vpack.c.b16 %v1068, %v1067
    %v1394 = vpack.c.b16 %v1070, %v1069
    %v1395 = vpack.c.b16 %v1072, %v1071
    %v1396 = vpack.c.b16 %v1074, %v1073
    %v1397 = vpack.c.b16 %v1076, %v1075
    %v1398 = vpack.c.b16 %v1078, %v1077
    %v1399 = vpack.c.b16 %v1080, %v1079
    %v1400 = vpack.c.b16 %v1082, %v1081
    %v1401 = vpack.c.b16 %v1084, %v1083
    %v1402 = vpack.c.b16 %v1086, %v1085
    %v1403 = vpack.c.b16 %v1088, %v1087
    %v1404 = vpack.c.b16 %v1090, %v1089
    %v1405 = vpack.c.b16 %v1092, %v1091
    %v1406 = vpack.c.b16 %v1094, %v1093
    %v1407 = vpack.c.b16 %v1096, %v1095
    %v1408 = vpack.c.b16 %v1098, %v1097
    %v1409 = vpack.c.b16 %v1100, %v1099
    %v1410 = vpack.c.b16 %v1102, %v1101
    %v1411 = vpack.c.b16 %v1104, %v1103
    %v1412 = vpack.c.b16 %v1106, %v1105
    %v1413 = vpack.c.b16 %v1108, %v1107
    %v1414 = vpack.c.b16 %v1110, %v1109
    %v1415 = vpack.c.b16 %v1112, %v1111
    %v1416 = vpack.c.b16 %v1114, %v1113
    %v1417 = vpack.c.b16 %v1116, %v1115
    %v1418 = vpack.c.b16 %v1118, %v1117
    %v1419 = vpack.c.b16 %v1120, %v1119
    %v1420 = vpack.c.b16 %v1122, %v1121
    %v1421 = vpack.c.b16 %v1124, %v1123
    %v1422 = vpack.c.b16 %v1126, %v1125
    %v1423 = vpack.c.b16 %v1128, %v1127
    %v1424 = vpack.c.b16 %v1130, %v1129
    %v1425 = vpack.c.b16 %v1132, %v1131
    %v1426 = vpack.c.b16 %v1134, %v1133
    %v1427 = vpack.c.b16 %v1136, %v1135
    %v1428 = vpack.c.b16 %v1138, %v1137
    %v1429 = vpack.c.b16 %v1140, %v1139
    %v1430 = vpack.c.b16 %v1142, %v1141
    %v1431 = vpack.c.b16 %v1144, %v1143
    %v1432 = vpack.c.b16 %v1146, %v1145
    %v1433 = vpack.c.b16 %v1148, %v1147
    %v1434 = vpack.c.b16 %v1150, %v1149
    %v1435 = vpack.c.b16 %v1152, %v1151
    %v1436 = vpack.c.b16 %v1154, %v1153
    %v1437 = vpack.c.b16 %v1156, %v1155
    %v1438 = vpack.c.b16 %v1158, %v1157
    %v1439 = vpack.c.b16 %v1160, %v1159
    %v1440 = vpack.c.b16 %v1162, %v1161
    %v1441 = vpack.c.b16 %v1164, %v1163
    %v1442 = vpack.c.b16 %v1166, %v1165
    %v1443 = vpack.c.b16 %v1168, %v1167
    %v1444 = vpack.c.b16 %v1170, %v1169
    %v1445 = vpack.c.b16 %v1172, %v1171
    %v1446 = vpack.c.b16 %v1174, %v1173
    %v1447 = vpack.c.b16 %v1176, %v1175
    %v1448 = vpack.c.b16 %v1178, %v1177
    %v1449 = vpack.c.b16 %v1180, %v1179
    %v1450 = vpack.c.b16 %v1182, %v1181
    %v1451 = vpack.c.b16 %v1184, %v1183
    %v1452 = vpack.c.b16 %v1186, %v1185
    %v1453 = vpack.c.b16 %v1188, %v1187
    %v1454 = vpack.c.b16 %v1190, %v1189
    %v1455 = vpack.c.b16 %v1192, %v1191
    %v1456 = vpack.c.b16 %v1194, %v1193
    %v1457 = vpack.c.b16 %v1196, %v1195
    %v1458 = vpack.c.b16 %v1198, %v1197
    %v1459 = vpack.c.b16 %v1200, %v1199
    %v1460 = vpack.c.b16 %v1202, %v1201
    %v1461 = vpack.c.b16 %v1204, %v1203
    %v1462 = vpack.c.b16 %v1206, %v1205
    %v1463 = vpack.c.b16 %v1208, %v1207
    %v1464 = vpack.c.b16 %v1210, %v1209
    %v1465 = vpack.c.b16 %v1212, %v1211
    %v1466 = vpack.c.b16 %v1214, %v1213
    %v1467 = vpack.c.b16 %v1216, %v1215
    %v1468 = vpack.c.b16 %v1218, %v1217
    %v1469 = vpack.c.b16 %v1220, %v1219
    %v1470 = vpack.c.b16 %v1222, %v1221
    %v1471 = vpack.c.b16 %v1224, %v1223
    %v1472 = vpack.c.b16 %v1226, %v1225
    %v1473 = vpack.c.b16 %v1228, %v1227
    %v1474 = vpack.c.b16 %v1230, %v1229
    %v1475 = vpack.c.b16 %v1232, %v1231
    %v1476 = vpack.c.b16 %v1234, %v1233
    %v1477 = vpack.c.b16 %v1236, %v1235
    %v1478 = vpack.c.b16 %v1238, %v1237
    %v1479 = vpack.c.b16 %v1240, %v1239
    %v1480 = vpack.c.b16 %v1242, %v1241
    %v1481 = vpack.c.b16 %v1244, %v1243
    %v1482 = vpack.c.b16 %v1246, %v1245
    %v1483 = vpack.c.b16 %v1248, %v1247
    %v1484 = vpack.c.b16 %v1250, %v1249
    %v1485 = vpack.c.b16 %v1252, %v1251
    %v1486 = vpack.c.b16 %v1254, %v1253
    %v1487 = vpack.c.b16 %v1256, %v1255
    %v1488 = vpack.c.b16 %v1258, %v1257
    %v1489 = vpack.c.b16 %v1260, %v1259
    %v1490 = vpack.c.b16 %v1262, %v1261
    %v1491 = vpack.c.b16 %v1264, %v1263
    %v1492 = vpack.c.b16 %v1266, %v1265
    %v1493 = vpack.c.b16 %v1268, %v1267
    %v1494 = vpack.c.b16 %v1270, %v1269
    %v1495 = vpack.c.b16 %v1272, %v1271
    %v1496 = vpack.c.b16 %v1274, %v1273
    %v1497 = vpack.c.b16 %v1276, %v1275
    %v1498 = vpack.c.b16 %v1278, %v1277
    %v1499 = vpack.c.b16 %v1280, %v1279
    %v1500 = vpack.c.b16 %v1282, %v1281
    %v1501 = vpack.c.b16 %v1284, %v1283
    %v1502 = vpack.c.b16 %v1286, %v1285
    %v1503 = vpack.c.b16 %v1288, %v1287
    %v1504 = vpack.c.b16 %v1290, %v1289
    %v1505 = vpack.c.b16 %v1292, %v1291
    %v1506 = vpack.c.b16 %v1294, %v1293
    %v1507 = vpack.c.b16 %v1296, %v1295
    %v1508 = vpack.c.b16 %v1298, %v1297
    %v1509 = vpack.c.b16 %v1300, %v1299
    %v1510 = vpack.c.b16 %v1302, %v1301
    %v1511 = vpack.c.b16 %v1304, %v1303
    %v1512 = vpack.c.b16 %v1306, %v1305
    %v1513 = vpack.c.b16 %v1308, %v1307
    %v1514 = vpack.c.b16 %v1310, %v1309
    %v1515 = vpack.c.b16 %v1312, %v1311
    %v1516 = vpack.c.b16 %v1314, %v1313
    %v1517 = vpack.c.b16 %v1316, %v1315
    %v1518 = vpack.c.b16 %v1318, %v1317
    %v1519 = vpack.c.b16 %v1320, %v1319
    %v1520 = vpack.c.b16 %v1322, %v1321
    %v1521 = vpack.c.b16 %v1324, %v1323
    %v1522 = vpack.c.b16 %v1326, %v1325
    %v1523 = vpack.c.b16 %v1328, %v1327
    %v1524 = vpack.c.b16 %v1330, %v1329
    %v1525 = vpack.c.b16 %v1332, %v1331
    %v1526 = vpack.c.b16 %v1334, %v1333
    %1719 = vmatprep.subr.bf16.mxu0 0
    %1720 = vmatpush1.bf16.msra.mxu0 %v1342
    %1721 = vmatprep.subr.bf16.mxu0 0
    %1722 = vmatpush1.bf16.msra.mxu0 %v1341
    %1723 = vmatprep.subr.bf16.mxu0 0
    %1724 = vmatpush1.bf16.msra.mxu0 %v1340
    %1725 = vmatprep.subr.bf16.mxu0 0
    %1726 = vmatpush1.bf16.msra.mxu0 %v1339
    %1727 = vmatprep.subr.bf16.mxu0 0
    %1728 = vmatpush1.bf16.msra.mxu0 %v1338
    %1729 = vmatprep.subr.bf16.mxu0 0
    %1730 = vmatpush1.bf16.msra.mxu0 %v1337
    %1731 = vmatprep.subr.bf16.mxu0 0
    %1732 = vmatpush1.bf16.msra.mxu0 %v1336
    %1733 = vmatprep.subr.bf16.mxu0 0
    %1734 = vmatpush1.bf16.msra.mxu0 %v1335
    %1735 = vmatprep.subr.bf16.mxu0 0
    %1736 = vmatpush2.bf16.msra.mxu0 %v1350
    %1737 = vmatprep.subr.bf16.mxu0 0
    %1738 = vmatpush2.bf16.msra.mxu0 %v1349
    %1739 = vmatprep.subr.bf16.mxu0 0
    %1740 = vmatpush2.bf16.msra.mxu0 %v1348
    %1741 = vmatprep.subr.bf16.mxu0 0
    %1742 = vmatpush2.bf16.msra.mxu0 %v1347
    %1743 = vmatprep.subr.bf16.mxu0 0
    %1744 = vmatpush2.bf16.msra.mxu0 %v1346
    %1745 = vmatprep.subr.bf16.mxu0 0
    %1746 = vmatpush2.bf16.msra.mxu0 %v1345
    %1747 = vmatprep.subr.bf16.mxu0 0
    %1748 = vmatpush2.bf16.msra.mxu0 %v1344
    %1749 = vmatprep.subr.bf16.mxu0 0
    %1750 = vmatpush2.bf16.msra.mxu0 %v1343
    %1751 = vmatprep.mubr.bf16.mxu0 %v520
    %1752 = vmatmul.mubr.bf16.gmra.mxu0 %v519
    %v1753 = vpop.f32.mrf.mxu0
    %v1754 = vadd.f32 0.0, %v1753
    %v1755 = vpop.f32.mrf.mxu0
    %v1756 = vpop.f32.mrf.mxu0
    %v1757 = vpop.f32.mrf.mxu0
    %1758 = vdwg.mxu0
    %1759 = vmatprep.subr.bf16.mxu0 0
    %1760 = vmatpush1.bf16.msra.mxu0 %v1358
    %1761 = vmatprep.subr.bf16.mxu0 0
    %1762 = vmatpush1.bf16.msra.mxu0 %v1357
    %1763 = vmatprep.subr.bf16.mxu0 0
    %1764 = vmatpush1.bf16.msra.mxu0 %v1356
    %1765 = vmatprep.subr.bf16.mxu0 0
    %1766 = vmatpush1.bf16.msra.mxu0 %v1355
    %1767 = vmatprep.subr.bf16.mxu0 0
    %1768 = vmatpush1.bf16.msra.mxu0 %v1354
    %1769 = vmatprep.subr.bf16.mxu0 0
    %1770 = vmatpush1.bf16.msra.mxu0 %v1353
    %1771 = vmatprep.subr.bf16.mxu0 0
    %1772 = vmatpush1.bf16.msra.mxu0 %v1352
    %1773 = vmatprep.subr.bf16.mxu0 0
    %1774 = vmatpush1.bf16.msra.mxu0 %v1351
    %1775 = vmatprep.subr.bf16.mxu0 0
    %1776 = vmatpush2.bf16.msra.mxu0 %v1366
    %1777 = vmatprep.subr.bf16.mxu0 0
    %1778 = vmatpush2.bf16.msra.mxu0 %v1365
    %1779 = vmatprep.subr.bf16.mxu0 0
    %1780 = vmatpush2.bf16.msra.mxu0 %v1364
    %1781 = vmatprep.subr.bf16.mxu0 0
    %1782 = vmatpush2.bf16.msra.mxu0 %v1363
    %1783 = vmatprep.subr.bf16.mxu0 0
    %1784 = vmatpush2.bf16.msra.mxu0 %v1362
    %1785 = vmatprep.subr.bf16.mxu0 0
    %1786 = vmatpush2.bf16.msra.mxu0 %v1361
    %1787 = vmatprep.subr.bf16.mxu0 0
    %1788 = vmatpush2.bf16.msra.mxu0 %v1360
    %1789 = vmatprep.subr.bf16.mxu0 0
    %1790 = vmatpush2.bf16.msra.mxu0 %v1359
    %1791 = vmatprep.mubr.bf16.mxu0 %v522
    %1792 = vmatmul.mubr.bf16.gmra.mxu0 %v521
    %v1793 = vpop.f32.mrf.mxu0
    %v1794 = vadd.f32 %v1754, %v1793
    %v1795 = vpop.f32.mrf.mxu0
    %v1796 = vpop.f32.mrf.mxu0
    %v1797 = vpop.f32.mrf.mxu0
    %1798 = vdwg.mxu0
    %1799 = vmatprep.subr.bf16.mxu0 0
    %1800 = vmatpush1.bf16.msra.mxu0 %v1374
    %1801 = vmatprep.subr.bf16.mxu0 0
    %1802 = vmatpush1.bf16.msra.mxu0 %v1373
    %1803 = vmatprep.subr.bf16.mxu0 0
    %1804 = vmatpush1.bf16.msra.mxu0 %v1372
    %1805 = vmatprep.subr.bf16.mxu0 0
    %1806 = vmatpush1.bf16.msra.mxu0 %v1371
    %1807 = vmatprep.subr.bf16.mxu0 0
    %1808 = vmatpush1.bf16.msra.mxu0 %v1370
    %1809 = vmatprep.subr.bf16.mxu0 0
    %1810 = vmatpush1.bf16.msra.mxu0 %v1369
    %1811 = vmatprep.subr.bf16.mxu0 0
    %1812 = vmatpush1.bf16.msra.mxu0 %v1368
    %1813 = vmatprep.subr.bf16.mxu0 0
    %1814 = vmatpush1.bf16.msra.mxu0 %v1367
    %1815 = vmatprep.subr.bf16.mxu0 0
    %1816 = vmatpush2.bf16.msra.mxu0 %v1382
    %1817 = vmatprep.subr.bf16.mxu0 0
    %1818 = vmatpush2.bf16.msra.mxu0 %v1381
    %1819 = vmatprep.subr.bf16.mxu0 0
    %1820 = vmatpush2.bf16.msra.mxu0 %v1380
    %1821 = vmatprep.subr.bf16.mxu0 0
    %1822 = vmatpush2.bf16.msra.mxu0 %v1379
    %1823 = vmatprep.subr.bf16.mxu0 0
    %1824 = vmatpush2.bf16.msra.mxu0 %v1378
    %1825 = vmatprep.subr.bf16.mxu0 0
    %1826 = vmatpush2.bf16.msra.mxu0 %v1377
    %1827 = vmatprep.subr.bf16.mxu0 0
    %1828 = vmatpush2.bf16.msra.mxu0 %v1376
    %1829 = vmatprep.subr.bf16.mxu0 0
    %1830 = vmatpush2.bf16.msra.mxu0 %v1375
    %1831 = vmatprep.mubr.bf16.mxu0 %v524
    %1832 = vmatmul.mubr.bf16.gmra.mxu0 %v523
    %v1833 = vpop.f32.mrf.mxu0
    %v1834 = vadd.f32 %v1794, %v1833
    %v1835 = vpop.f32.mrf.mxu0
    %v1836 = vpop.f32.mrf.mxu0
    %v1837 = vpop.f32.mrf.mxu0
    %1838 = vdwg.mxu0
    %1839 = vmatprep.subr.bf16.mxu0 0
    %1840 = vmatpush1.bf16.msra.mxu0 %v1390
    %1841 = vmatprep.subr.bf16.mxu0 0
    %1842 = vmatpush1.bf16.msra.mxu0 %v1389
    %1843 = vmatprep.subr.bf16.mxu0 0
    %1844 = vmatpush1.bf16.msra.mxu0 %v1388
    %1845 = vmatprep.subr.bf16.mxu0 0
    %1846 = vmatpush1.bf16.msra.mxu0 %v1387
    %1847 = vmatprep.subr.bf16.mxu0 0
    %1848 = vmatpush1.bf16.msra.mxu0 %v1386
    %1849 = vmatprep.subr.bf16.mxu0 0
    %1850 = vmatpush1.bf16.msra.mxu0 %v1385
    %1851 = vmatprep.subr.bf16.mxu0 0
    %1852 = vmatpush1.bf16.msra.mxu0 %v1384
    %1853 = vmatprep.subr.bf16.mxu0 0
    %1854 = vmatpush1.bf16.msra.mxu0 %v1383
    %1855 = vmatprep.subr.bf16.mxu0 0
    %1856 = vmatpush2.bf16.msra.mxu0 %v1398
    %1857 = vmatprep.subr.bf16.mxu0 0
    %1858 = vmatpush2.bf16.msra.mxu0 %v1397
    %1859 = vmatprep.subr.bf16.mxu0 0
    %1860 = vmatpush2.bf16.msra.mxu0 %v1396
    %1861 = vmatprep.subr.bf16.mxu0 0
    %1862 = vmatpush2.bf16.msra.mxu0 %v1395
    %1863 = vmatprep.subr.bf16.mxu0 0
    %1864 = vmatpush2.bf16.msra.mxu0 %v1394
    %1865 = vmatprep.subr.bf16.mxu0 0
    %1866 = vmatpush2.bf16.msra.mxu0 %v1393
    %1867 = vmatprep.subr.bf16.mxu0 0
    %1868 = vmatpush2.bf16.msra.mxu0 %v1392
    %1869 = vmatprep.subr.bf16.mxu0 0
    %1870 = vmatpush2.bf16.msra.mxu0 %v1391
    %1871 = vmatprep.mubr.bf16.mxu0 %v526
    %1872 = vmatmul.mubr.bf16.gmra.mxu0 %v525
    %v1873 = vpop.f32.mrf.mxu0
    %v1874 = vadd.f32 %v1834, %v1873
    %v1875 = vpop.f32.mrf.mxu0
    %v1876 = vpop.f32.mrf.mxu0
    %v1877 = vpop.f32.mrf.mxu0
    %1878 = vdwg.mxu0
    %1879 = vmatprep.subr.bf16.mxu0 0
    %1880 = vmatpush1.bf16.msra.mxu0 %v1406
    %1881 = vmatprep.subr.bf16.mxu0 0
    %1882 = vmatpush1.bf16.msra.mxu0 %v1405
    %1883 = vmatprep.subr.bf16.mxu0 0
    %1884 = vmatpush1.bf16.msra.mxu0 %v1404
    %1885 = vmatprep.subr.bf16.mxu0 0
    %1886 = vmatpush1.bf16.msra.mxu0 %v1403
    %1887 = vmatprep.subr.bf16.mxu0 0
    %1888 = vmatpush1.bf16.msra.mxu0 %v1402
    %1889 = vmatprep.subr.bf16.mxu0 0
    %1890 = vmatpush1.bf16.msra.mxu0 %v1401
    %1891 = vmatprep.subr.bf16.mxu0 0
    %1892 = vmatpush1.bf16.msra.mxu0 %v1400
    %1893 = vmatprep.subr.bf16.mxu0 0
    %1894 = vmatpush1.bf16.msra.mxu0 %v1399
    %1895 = vmatprep.subr.bf16.mxu0 0
    %1896 = vmatpush2.bf16.msra.mxu0 %v1414
    %1897 = vmatprep.subr.bf16.mxu0 0
    %1898 = vmatpush2.bf16.msra.mxu0 %v1413
    %1899 = vmatprep.subr.bf16.mxu0 0
    %1900 = vmatpush2.bf16.msra.mxu0 %v1412
    %1901 = vmatprep.subr.bf16.mxu0 0
    %1902 = vmatpush2.bf16.msra.mxu0 %v1411
    %1903 = vmatprep.subr.bf16.mxu0 0
    %1904 = vmatpush2.bf16.msra.mxu0 %v1410
    %1905 = vmatprep.subr.bf16.mxu0 0
    %1906 = vmatpush2.bf16.msra.mxu0 %v1409
    %1907 = vmatprep.subr.bf16.mxu0 0
    %1908 = vmatpush2.bf16.msra.mxu0 %v1408
    %1909 = vmatprep.subr.bf16.mxu0 0
    %1910 = vmatpush2.bf16.msra.mxu0 %v1407
    %1911 = vmatprep.mubr.bf16.mxu0 %v528
    %1912 = vmatmul.mubr.bf16.gmra.mxu0 %v527
    %v1913 = vpop.f32.mrf.mxu0
    %v1914 = vadd.f32 %v1874, %v1913
    %v1915 = vpop.f32.mrf.mxu0
    %v1916 = vpop.f32.mrf.mxu0
    %v1917 = vpop.f32.mrf.mxu0
    %1918 = vdwg.mxu0
    %1919 = vmatprep.subr.bf16.mxu0 0
    %1920 = vmatpush1.bf16.msra.mxu0 %v1422
    %1921 = vmatprep.subr.bf16.mxu0 0
    %1922 = vmatpush1.bf16.msra.mxu0 %v1421
    %1923 = vmatprep.subr.bf16.mxu0 0
    %1924 = vmatpush1.bf16.msra.mxu0 %v1420
    %1925 = vmatprep.subr.bf16.mxu0 0
    %1926 = vmatpush1.bf16.msra.mxu0 %v1419
    %1927 = vmatprep.subr.bf16.mxu0 0
    %1928 = vmatpush1.bf16.msra.mxu0 %v1418
    %1929 = vmatprep.subr.bf16.mxu0 0
    %1930 = vmatpush1.bf16.msra.mxu0 %v1417
    %1931 = vmatprep.subr.bf16.mxu0 0
    %1932 = vmatpush1.bf16.msra.mxu0 %v1416
    %1933 = vmatprep.subr.bf16.mxu0 0
    %1934 = vmatpush1.bf16.msra.mxu0 %v1415
    %1935 = vmatprep.subr.bf16.mxu0 0
    %1936 = vmatpush2.bf16.msra.mxu0 %v1430
    %1937 = vmatprep.subr.bf16.mxu0 0
    %1938 = vmatpush2.bf16.msra.mxu0 %v1429
    %1939 = vmatprep.subr.bf16.mxu0 0
    %1940 = vmatpush2.bf16.msra.mxu0 %v1428
    %1941 = vmatprep.subr.bf16.mxu0 0
    %1942 = vmatpush2.bf16.msra.mxu0 %v1427
    %1943 = vmatprep.subr.bf16.mxu0 0
    %1944 = vmatpush2.bf16.msra.mxu0 %v1426
    %1945 = vmatprep.subr.bf16.mxu0 0
    %1946 = vmatpush2.bf16.msra.mxu0 %v1425
    %1947 = vmatprep.subr.bf16.mxu0 0
    %1948 = vmatpush2.bf16.msra.mxu0 %v1424
    %1949 = vmatprep.subr.bf16.mxu0 0
    %1950 = vmatpush2.bf16.msra.mxu0 %v1423
    %1951 = vmatprep.mubr.bf16.mxu0 %v530
    %1952 = vmatmul.mubr.bf16.gmra.mxu0 %v529
    %v1953 = vpop.f32.mrf.mxu0
    %v1954 = vadd.f32 %v1914, %v1953
    %v1955 = vpop.f32.mrf.mxu0
    %v1956 = vpop.f32.mrf.mxu0
    %v1957 = vpop.f32.mrf.mxu0
    %1958 = vdwg.mxu0
    %1959 = vmatprep.subr.bf16.mxu0 0
    %1960 = vmatpush1.bf16.msra.mxu0 %v1438
    %1961 = vmatprep.subr.bf16.mxu0 0
    %1962 = vmatpush1.bf16.msra.mxu0 %v1437
    %1963 = vmatprep.subr.bf16.mxu0 0
    %1964 = vmatpush1.bf16.msra.mxu0 %v1436
    %1965 = vmatprep.subr.bf16.mxu0 0
    %1966 = vmatpush1.bf16.msra.mxu0 %v1435
    %1967 = vmatprep.subr.bf16.mxu0 0
    %1968 = vmatpush1.bf16.msra.mxu0 %v1434
    %1969 = vmatprep.subr.bf16.mxu0 0
    %1970 = vmatpush1.bf16.msra.mxu0 %v1433
    %1971 = vmatprep.subr.bf16.mxu0 0
    %1972 = vmatpush1.bf16.msra.mxu0 %v1432
    %1973 = vmatprep.subr.bf16.mxu0 0
    %1974 = vmatpush1.bf16.msra.mxu0 %v1431
    %1975 = vmatprep.subr.bf16.mxu0 0
    %1976 = vmatpush2.bf16.msra.mxu0 %v1446
    %1977 = vmatprep.subr.bf16.mxu0 0
    %1978 = vmatpush2.bf16.msra.mxu0 %v1445
    %1979 = vmatprep.subr.bf16.mxu0 0
    %1980 = vmatpush2.bf16.msra.mxu0 %v1444
    %1981 = vmatprep.subr.bf16.mxu0 0
    %1982 = vmatpush2.bf16.msra.mxu0 %v1443
    %1983 = vmatprep.subr.bf16.mxu0 0
    %1984 = vmatpush2.bf16.msra.mxu0 %v1442
    %1985 = vmatprep.subr.bf16.mxu0 0
    %1986 = vmatpush2.bf16.msra.mxu0 %v1441
    %1987 = vmatprep.subr.bf16.mxu0 0
    %1988 = vmatpush2.bf16.msra.mxu0 %v1440
    %1989 = vmatprep.subr.bf16.mxu0 0
    %1990 = vmatpush2.bf16.msra.mxu0 %v1439
    %1991 = vmatprep.mubr.bf16.mxu0 %v532
    %1992 = vmatmul.mubr.bf16.gmra.mxu0 %v531
    %v1993 = vpop.f32.mrf.mxu0
    %v1994 = vadd.f32 %v1954, %v1993
    %v1995 = vpop.f32.mrf.mxu0
    %v1996 = vpop.f32.mrf.mxu0
    %v1997 = vpop.f32.mrf.mxu0
    %1998 = vdwg.mxu0
    %1999 = vmatprep.subr.bf16.mxu0 0
    %2000 = vmatpush1.bf16.msra.mxu0 %v1454
    %2001 = vmatprep.subr.bf16.mxu0 0
    %2002 = vmatpush1.bf16.msra.mxu0 %v1453
    %2003 = vmatprep.subr.bf16.mxu0 0
    %2004 = vmatpush1.bf16.msra.mxu0 %v1452
    %2005 = vmatprep.subr.bf16.mxu0 0
    %2006 = vmatpush1.bf16.msra.mxu0 %v1451
    %2007 = vmatprep.subr.bf16.mxu0 0
    %2008 = vmatpush1.bf16.msra.mxu0 %v1450
    %2009 = vmatprep.subr.bf16.mxu0 0
    %2010 = vmatpush1.bf16.msra.mxu0 %v1449
    %2011 = vmatprep.subr.bf16.mxu0 0
    %2012 = vmatpush1.bf16.msra.mxu0 %v1448
    %2013 = vmatprep.subr.bf16.mxu0 0
    %2014 = vmatpush1.bf16.msra.mxu0 %v1447
    %2015 = vmatprep.subr.bf16.mxu0 0
    %2016 = vmatpush2.bf16.msra.mxu0 %v1462
    %2017 = vmatprep.subr.bf16.mxu0 0
    %2018 = vmatpush2.bf16.msra.mxu0 %v1461
    %2019 = vmatprep.subr.bf16.mxu0 0
    %2020 = vmatpush2.bf16.msra.mxu0 %v1460
    %2021 = vmatprep.subr.bf16.mxu0 0
    %2022 = vmatpush2.bf16.msra.mxu0 %v1459
    %2023 = vmatprep.subr.bf16.mxu0 0
    %2024 = vmatpush2.bf16.msra.mxu0 %v1458
    %2025 = vmatprep.subr.bf16.mxu0 0
    %2026 = vmatpush2.bf16.msra.mxu0 %v1457
    %2027 = vmatprep.subr.bf16.mxu0 0
    %2028 = vmatpush2.bf16.msra.mxu0 %v1456
    %2029 = vmatprep.subr.bf16.mxu0 0
    %2030 = vmatpush2.bf16.msra.mxu0 %v1455
    %2031 = vmatprep.mubr.bf16.mxu0 %v534
    %2032 = vmatmul.mubr.bf16.gmra.mxu0 %v533
    %v2033 = vpop.f32.mrf.mxu0
    %v2034 = vadd.f32 %v1994, %v2033
    %v2035 = vpop.f32.mrf.mxu0
    %v2036 = vpop.f32.mrf.mxu0
    %v2037 = vpop.f32.mrf.mxu0
    %2038 = vdwg.mxu0
    %2039 = vmatprep.subr.bf16.mxu0 0
    %2040 = vmatpush1.bf16.msra.mxu0 %v1470
    %2041 = vmatprep.subr.bf16.mxu0 0
    %2042 = vmatpush1.bf16.msra.mxu0 %v1469
    %2043 = vmatprep.subr.bf16.mxu0 0
    %2044 = vmatpush1.bf16.msra.mxu0 %v1468
    %2045 = vmatprep.subr.bf16.mxu0 0
    %2046 = vmatpush1.bf16.msra.mxu0 %v1467
    %2047 = vmatprep.subr.bf16.mxu0 0
    %2048 = vmatpush1.bf16.msra.mxu0 %v1466
    %2049 = vmatprep.subr.bf16.mxu0 0
    %2050 = vmatpush1.bf16.msra.mxu0 %v1465
    %2051 = vmatprep.subr.bf16.mxu0 0
    %2052 = vmatpush1.bf16.msra.mxu0 %v1464
    %2053 = vmatprep.subr.bf16.mxu0 0
    %2054 = vmatpush1.bf16.msra.mxu0 %v1463
    %2055 = vmatprep.subr.bf16.mxu0 0
    %2056 = vmatpush2.bf16.msra.mxu0 %v1478
    %2057 = vmatprep.subr.bf16.mxu0 0
    %2058 = vmatpush2.bf16.msra.mxu0 %v1477
    %2059 = vmatprep.subr.bf16.mxu0 0
    %2060 = vmatpush2.bf16.msra.mxu0 %v1476
    %2061 = vmatprep.subr.bf16.mxu0 0
    %2062 = vmatpush2.bf16.msra.mxu0 %v1475
    %2063 = vmatprep.subr.bf16.mxu0 0
    %2064 = vmatpush2.bf16.msra.mxu0 %v1474
    %2065 = vmatprep.subr.bf16.mxu0 0
    %2066 = vmatpush2.bf16.msra.mxu0 %v1473
    %2067 = vmatprep.subr.bf16.mxu0 0
    %2068 = vmatpush2.bf16.msra.mxu0 %v1472
    %2069 = vmatprep.subr.bf16.mxu0 0
    %2070 = vmatpush2.bf16.msra.mxu0 %v1471
    %2071 = vmatprep.mubr.bf16.mxu0 %v536
    %2072 = vmatmul.mubr.bf16.gmra.mxu0 %v535
    %v2073 = vpop.f32.mrf.mxu0
    %v2074 = vadd.f32 %v2034, %v2073
    %v2075 = vpop.f32.mrf.mxu0
    %v2076 = vpop.f32.mrf.mxu0
    %v2077 = vpop.f32.mrf.mxu0
    %2078 = vdwg.mxu0
    %2079 = vmatprep.subr.bf16.mxu0 0
    %2080 = vmatpush1.bf16.msra.mxu0 %v1486
    %2081 = vmatprep.subr.bf16.mxu0 0
    %2082 = vmatpush1.bf16.msra.mxu0 %v1485
    %2083 = vmatprep.subr.bf16.mxu0 0
    %2084 = vmatpush1.bf16.msra.mxu0 %v1484
    %2085 = vmatprep.subr.bf16.mxu0 0
    %2086 = vmatpush1.bf16.msra.mxu0 %v1483
    %2087 = vmatprep.subr.bf16.mxu0 0
    %2088 = vmatpush1.bf16.msra.mxu0 %v1482
    %2089 = vmatprep.subr.bf16.mxu0 0
    %2090 = vmatpush1.bf16.msra.mxu0 %v1481
    %2091 = vmatprep.subr.bf16.mxu0 0
    %2092 = vmatpush1.bf16.msra.mxu0 %v1480
    %2093 = vmatprep.subr.bf16.mxu0 0
    %2094 = vmatpush1.bf16.msra.mxu0 %v1479
    %2095 = vmatprep.subr.bf16.mxu0 0
    %2096 = vmatpush2.bf16.msra.mxu0 %v1494
    %2097 = vmatprep.subr.bf16.mxu0 0
    %2098 = vmatpush2.bf16.msra.mxu0 %v1493
    %2099 = vmatprep.subr.bf16.mxu0 0
    %2100 = vmatpush2.bf16.msra.mxu0 %v1492
    %2101 = vmatprep.subr.bf16.mxu0 0
    %2102 = vmatpush2.bf16.msra.mxu0 %v1491
    %2103 = vmatprep.subr.bf16.mxu0 0
    %2104 = vmatpush2.bf16.msra.mxu0 %v1490
    %2105 = vmatprep.subr.bf16.mxu0 0
    %2106 = vmatpush2.bf16.msra.mxu0 %v1489
    %2107 = vmatprep.subr.bf16.mxu0 0
    %2108 = vmatpush2.bf16.msra.mxu0 %v1488
    %2109 = vmatprep.subr.bf16.mxu0 0
    %2110 = vmatpush2.bf16.msra.mxu0 %v1487
    %2111 = vmatprep.mubr.bf16.mxu0 %v538
    %2112 = vmatmul.mubr.bf16.gmra.mxu0 %v537
    %v2113 = vpop.f32.mrf.mxu0
    %v2114 = vadd.f32 %v2074, %v2113
    %v2115 = vpop.f32.mrf.mxu0
    %v2116 = vpop.f32.mrf.mxu0
    %v2117 = vpop.f32.mrf.mxu0
    %2118 = vdwg.mxu0
    %2119 = vmatprep.subr.bf16.mxu0 0
    %2120 = vmatpush1.bf16.msra.mxu0 %v1502
    %2121 = vmatprep.subr.bf16.mxu0 0
    %2122 = vmatpush1.bf16.msra.mxu0 %v1501
    %2123 = vmatprep.subr.bf16.mxu0 0
    %2124 = vmatpush1.bf16.msra.mxu0 %v1500
    %2125 = vmatprep.subr.bf16.mxu0 0
    %2126 = vmatpush1.bf16.msra.mxu0 %v1499
    %2127 = vmatprep.subr.bf16.mxu0 0
    %2128 = vmatpush1.bf16.msra.mxu0 %v1498
    %2129 = vmatprep.subr.bf16.mxu0 0
    %2130 = vmatpush1.bf16.msra.mxu0 %v1497
    %2131 = vmatprep.subr.bf16.mxu0 0
    %2132 = vmatpush1.bf16.msra.mxu0 %v1496
    %2133 = vmatprep.subr.bf16.mxu0 0
    %2134 = vmatpush1.bf16.msra.mxu0 %v1495
    %2135 = vmatprep.subr.bf16.mxu0 0
    %2136 = vmatpush2.bf16.msra.mxu0 %v1510
    %2137 = vmatprep.subr.bf16.mxu0 0
    %2138 = vmatpush2.bf16.msra.mxu0 %v1509
    %2139 = vmatprep.subr.bf16.mxu0 0
    %2140 = vmatpush2.bf16.msra.mxu0 %v1508
    %2141 = vmatprep.subr.bf16.mxu0 0
    %2142 = vmatpush2.bf16.msra.mxu0 %v1507
    %2143 = vmatprep.subr.bf16.mxu0 0
    %2144 = vmatpush2.bf16.msra.mxu0 %v1506
    %2145 = vmatprep.subr.bf16.mxu0 0
    %2146 = vmatpush2.bf16.msra.mxu0 %v1505
    %2147 = vmatprep.subr.bf16.mxu0 0
    %2148 = vmatpush2.bf16.msra.mxu0 %v1504
    %2149 = vmatprep.subr.bf16.mxu0 0
    %2150 = vmatpush2.bf16.msra.mxu0 %v1503
    %2151 = vmatprep.mubr.bf16.mxu0 %v540
    %2152 = vmatmul.mubr.bf16.gmra.mxu0 %v539
    %v2153 = vpop.f32.mrf.mxu0
    %v2154 = vadd.f32 %v2114, %v2153
    %v2155 = vpop.f32.mrf.mxu0
    %v2156 = vpop.f32.mrf.mxu0
    %v2157 = vpop.f32.mrf.mxu0
    %2158 = vdwg.mxu0
    %2159 = vmatprep.subr.bf16.mxu0 0
    %2160 = vmatpush1.bf16.msra.mxu0 %v1518
    %2161 = vmatprep.subr.bf16.mxu0 0
    %2162 = vmatpush1.bf16.msra.mxu0 %v1517
    %2163 = vmatprep.subr.bf16.mxu0 0
    %2164 = vmatpush1.bf16.msra.mxu0 %v1516
    %2165 = vmatprep.subr.bf16.mxu0 0
    %2166 = vmatpush1.bf16.msra.mxu0 %v1515
    %2167 = vmatprep.subr.bf16.mxu0 0
    %2168 = vmatpush1.bf16.msra.mxu0 %v1514
    %2169 = vmatprep.subr.bf16.mxu0 0
    %2170 = vmatpush1.bf16.msra.mxu0 %v1513
    %2171 = vmatprep.subr.bf16.mxu0 0
    %2172 = vmatpush1.bf16.msra.mxu0 %v1512
    %2173 = vmatprep.subr.bf16.mxu0 0
    %2174 = vmatpush1.bf16.msra.mxu0 %v1511
    %2175 = vmatprep.subr.bf16.mxu0 0
    %2176 = vmatpush2.bf16.msra.mxu0 %v1526
    %2177 = vmatprep.subr.bf16.mxu0 0
    %2178 = vmatpush2.bf16.msra.mxu0 %v1525
    %2179 = vmatprep.subr.bf16.mxu0 0
    %2180 = vmatpush2.bf16.msra.mxu0 %v1524
    %2181 = vmatprep.subr.bf16.mxu0 0
    %2182 = vmatpush2.bf16.msra.mxu0 %v1523
    %2183 = vmatprep.subr.bf16.mxu0 0
    %2184 = vmatpush2.bf16.msra.mxu0 %v1522
    %2185 = vmatprep.subr.bf16.mxu0 0
    %2186 = vmatpush2.bf16.msra.mxu0 %v1521
    %2187 = vmatprep.subr.bf16.mxu0 0
    %2188 = vmatpush2.bf16.msra.mxu0 %v1520
    %2189 = vmatprep.subr.bf16.mxu0 0
    %2190 = vmatpush2.bf16.msra.mxu0 %v1519
    %2191 = vmatprep.mubr.bf16.mxu0 %v542
    %2192 = vmatmul.mubr.bf16.gmra.mxu0 %v541
    %v2193 = vpop.f32.mrf.mxu0
    %v2194 = vadd.f32 %v2154, %v2193
    %v2195 = vpop.f32.mrf.mxu0
    %v2196 = vpop.f32.mrf.mxu0
    %v2197 = vpop.f32.mrf.mxu0
    %2198 = vdwg.mxu0
    %v2199 = vadd.f32 %v86, %v2194
    %2200 = vst [vmem:[#allocation2] sm:$0xff] %v2199
    // Predicated region
    $region50: #{tpu_custom_call.1} parent=1 // pred_check
      %p2201 = pneg %p81
    $region51: #{tpu_custom_call.1} parent=1 // pred_check_branch
      %2203 = sbr.rel (%p2201) target = $region53
    $region52: #{tpu_custom_call.1} parent=1 // pred_region
      %v2204 = vld [vmem:[#allocation2] sm:$0xff]
      %v2205 = vld [vmem:[%s2] sm:$0x1]
      %v2207 = vlaneseq
      %v2208 = vshrl.u32 %v2207, 7
      %v2209 = vsub.s32 0, %v2208
      %v2210 = vrot.slane %v2205, %v2209
      %v2212 = vadd.f32 %v2204, %v2210
      %v2213 = vmax.f32 %v2212, 0.0
      %v2214 = vpack.c.bf16 %v2213, %v2213
      %v2215 = vld [vmem:[#allocation8] sm:$0xf]
      %v2216 = vld [vmem:[#allocation8 + $0x4] sm:$0xf]
      %v2217 = vld [vmem:[#allocation8 + $0x8] sm:$0xf]
      %v2218 = vld [vmem:[#allocation8 + $0xc] sm:$0xf]
      %v2219 = vld [vmem:[#allocation8 + $0x10] sm:$0xf]
      %v2220 = vld [vmem:[#allocation8 + $0x14] sm:$0xf]
      %v2221 = vld [vmem:[#allocation8 + $0x18] sm:$0xf]
      %v2222 = vld [vmem:[#allocation8 + $0x1c] sm:$0xf]
      %v2223 = vld [vmem:[#allocation8 + $0x20] sm:$0xf]
      %v2224 = vld [vmem:[#allocation8 + $0x24] sm:$0xf]
      %v2225 = vld [vmem:[#allocation8 + $0x28] sm:$0xf]
      %v2226 = vld [vmem:[#allocation8 + $0x2c] sm:$0xf]
      %v2227 = vld [vmem:[#allocation8 + $0x30] sm:$0xf]
      %v2228 = vld [vmem:[#allocation8 + $0x34] sm:$0xf]
      %v2229 = vld [vmem:[#allocation8 + $0x38] sm:$0xf]
      %v2230 = vld [vmem:[#allocation8 + $0x3c] sm:$0xf]
      %v2231 = vld [vmem:[%s4] sm:$0x1]
      %v2233 = vlaneseq
      %v2234 = vshrl.u32 %v2233, 7
      %v2235 = vsub.s32 0, %v2234
      %v2236 = vrot.slane %v2231, %v2235
      %v2254 = vunpack.c.l.b16 %v2215
      %v2255 = vunpack.c.l.b16 %v2216
      %v2256 = vunpack.c.l.b16 %v2217
      %v2257 = vunpack.c.l.b16 %v2218
      %v2258 = vunpack.c.l.b16 %v2219
      %v2259 = vunpack.c.l.b16 %v2220
      %v2260 = vunpack.c.l.b16 %v2221
      %v2261 = vunpack.c.l.b16 %v2222
      %v2262 = vunpack.c.l.b16 %v2223
      %v2263 = vunpack.c.l.b16 %v2224
      %v2264 = vunpack.c.l.b16 %v2225
      %v2265 = vunpack.c.l.b16 %v2226
      %v2266 = vunpack.c.l.b16 %v2227
      %v2267 = vunpack.c.l.b16 %v2228
      %v2268 = vunpack.c.l.b16 %v2229
      %v2269 = vunpack.c.l.b16 %v2230
      %v2270 = vpack.c.b16 %v2255, %v2254
      %v2271 = vpack.c.b16 %v2257, %v2256
      %v2272 = vpack.c.b16 %v2259, %v2258
      %v2273 = vpack.c.b16 %v2261, %v2260
      %v2274 = vpack.c.b16 %v2263, %v2262
      %v2275 = vpack.c.b16 %v2265, %v2264
      %v2276 = vpack.c.b16 %v2267, %v2266
      %v2277 = vpack.c.b16 %v2269, %v2268
      %2286 = vmatprep.subr.bf16.mxu0 0
      %2287 = vmatpush1.bf16.msra.mxu0 %v2277
      %2288 = vmatprep.subr.bf16.mxu0 0
      %2289 = vmatpush1.bf16.msra.mxu0 %v2276
      %2290 = vmatprep.subr.bf16.mxu0 0
      %2291 = vmatpush1.bf16.msra.mxu0 %v2275
      %2292 = vmatprep.subr.bf16.mxu0 0
      %2293 = vmatpush1.bf16.msra.mxu0 %v2274
      %2294 = vmatprep.subr.bf16.mxu0 0
      %2295 = vmatpush1.bf16.msra.mxu0 %v2273
      %2296 = vmatprep.subr.bf16.mxu0 0
      %2297 = vmatpush1.bf16.msra.mxu0 %v2272
      %2298 = vmatprep.subr.bf16.mxu0 0
      %2299 = vmatpush1.bf16.msra.mxu0 %v2271
      %2300 = vmatprep.subr.bf16.mxu0 0
      %2301 = vmatpush1.bf16.msra.mxu0 %v2270
      %2302 = vmatprep.subr.bf16.mxu0 0
      %2303 = vmatpush2.bf16.msra.mxu0 0
      %2304 = vmatprep.subr.bf16.mxu0 0
      %2305 = vmatpush2.bf16.msra.mxu0 0
      %2306 = vmatprep.subr.bf16.mxu0 0
      %2307 = vmatpush2.bf16.msra.mxu0 0
      %2308 = vmatprep.subr.bf16.mxu0 0
      %2309 = vmatpush2.bf16.msra.mxu0 0
      %2310 = vmatprep.subr.bf16.mxu0 0
      %2311 = vmatpush2.bf16.msra.mxu0 0
      %2312 = vmatprep.subr.bf16.mxu0 0
      %2313 = vmatpush2.bf16.msra.mxu0 0
      %2314 = vmatprep.subr.bf16.mxu0 0
      %2315 = vmatpush2.bf16.msra.mxu0 0
      %2316 = vmatprep.subr.bf16.mxu0 0
      %2317 = vmatpush2.bf16.msra.mxu0 0
      %2318 = vmatprep.mubr.bf16.mxu0 0
      %2319 = vmatmul.mubr.bf16.gmra.mxu0 %v2214
      %v2320 = vpop.f32.mrf.mxu0
      %v2321 = vadd.f32 %v2236, %v2320
      %v2322 = vpop.f32.mrf.mxu0
      %v2323 = vpop.f32.mrf.mxu0
      %v2324 = vpop.f32.mrf.mxu0
      %2325 = vdwg.mxu0
      %v2326 = vmax.f32 %v2321, 0.0
      %v2327 = vpack.c.bf16 %v2326, %v2326
      %s2328 = scalar_lea.vmem [#allocation8], 64
      %v2329 = vld [vmem:[%s2328] sm:$0xf]
      %v2330 = vld [vmem:[%s2328 + $0x4] sm:$0xf]
      %v2331 = vld [vmem:[%s2328 + $0x8] sm:$0xf]
      %v2332 = vld [vmem:[%s2328 + $0xc] sm:$0xf]
      %v2333 = vld [vmem:[%s2328 + $0x10] sm:$0xf]
      %v2334 = vld [vmem:[%s2328 + $0x14] sm:$0xf]
      %v2335 = vld [vmem:[%s2328 + $0x18] sm:$0xf]
      %v2336 = vld [vmem:[%s2328 + $0x1c] sm:$0xf]
      %v2337 = vld [vmem:[%s2328 + $0x20] sm:$0xf]
      %v2338 = vld [vmem:[%s2328 + $0x24] sm:$0xf]
      %v2339 = vld [vmem:[%s2328 + $0x28] sm:$0xf]
      %v2340 = vld [vmem:[%s2328 + $0x2c] sm:$0xf]
      %v2341 = vld [vmem:[%s2328 + $0x30] sm:$0xf]
      %v2342 = vld [vmem:[%s2328 + $0x34] sm:$0xf]
      %v2343 = vld [vmem:[%s2328 + $0x38] sm:$0xf]
      %v2344 = vld [vmem:[%s2328 + $0x3c] sm:$0xf]
      %s2345 = scalar_lea.vmem %s4, 1
      %v2346 = vld [vmem:[%s2345] sm:$0x1]
      %v2348 = vlaneseq
      %v2349 = vshrl.u32 %v2348, 7
      %v2350 = vsub.s32 0, %v2349
      %v2351 = vrot.slane %v2346, %v2350
      %v2369 = vunpack.c.l.b16 %v2329
      %v2370 = vunpack.c.l.b16 %v2330
      %v2371 = vunpack.c.l.b16 %v2331
      %v2372 = vunpack.c.l.b16 %v2332
      %v2373 = vunpack.c.l.b16 %v2333
      %v2374 = vunpack.c.l.b16 %v2334
      %v2375 = vunpack.c.l.b16 %v2335
      %v2376 = vunpack.c.l.b16 %v2336
      %v2377 = vunpack.c.l.b16 %v2337
      %v2378 = vunpack.c.l.b16 %v2338
      %v2379 = vunpack.c.l.b16 %v2339
      %v2380 = vunpack.c.l.b16 %v2340
      %v2381 = vunpack.c.l.b16 %v2341
      %v2382 = vunpack.c.l.b16 %v2342
      %v2383 = vunpack.c.l.b16 %v2343
      %v2384 = vunpack.c.l.b16 %v2344
      %v2385 = vpack.c.b16 %v2370, %v2369
      %v2386 = vpack.c.b16 %v2372, %v2371
      %v2387 = vpack.c.b16 %v2374, %v2373
      %v2388 = vpack.c.b16 %v2376, %v2375
      %v2389 = vpack.c.b16 %v2378, %v2377
      %v2390 = vpack.c.b16 %v2380, %v2379
      %v2391 = vpack.c.b16 %v2382, %v2381
      %v2392 = vpack.c.b16 %v2384, %v2383
      %2401 = vmatprep.subr.bf16.mxu0 0
      %2402 = vmatpush1.bf16.msra.mxu0 %v2392
      %2403 = vmatprep.subr.bf16.mxu0 0
      %2404 = vmatpush1.bf16.msra.mxu0 %v2391
      %2405 = vmatprep.subr.bf16.mxu0 0
      %2406 = vmatpush1.bf16.msra.mxu0 %v2390
      %2407 = vmatprep.subr.bf16.mxu0 0
      %2408 = vmatpush1.bf16.msra.mxu0 %v2389
      %2409 = vmatprep.subr.bf16.mxu0 0
      %2410 = vmatpush1.bf16.msra.mxu0 %v2388
      %2411 = vmatprep.subr.bf16.mxu0 0
      %2412 = vmatpush1.bf16.msra.mxu0 %v2387
      %2413 = vmatprep.subr.bf16.mxu0 0
      %2414 = vmatpush1.bf16.msra.mxu0 %v2386
      %2415 = vmatprep.subr.bf16.mxu0 0
      %2416 = vmatpush1.bf16.msra.mxu0 %v2385
      %2417 = vmatprep.subr.bf16.mxu0 0
      %2418 = vmatpush2.bf16.msra.mxu0 0
      %2419 = vmatprep.subr.bf16.mxu0 0
      %2420 = vmatpush2.bf16.msra.mxu0 0
      %2421 = vmatprep.subr.bf16.mxu0 0
      %2422 = vmatpush2.bf16.msra.mxu0 0
      %2423 = vmatprep.subr.bf16.mxu0 0
      %2424 = vmatpush2.bf16.msra.mxu0 0
      %2425 = vmatprep.subr.bf16.mxu0 0
      %2426 = vmatpush2.bf16.msra.mxu0 0
      %2427 = vmatprep.subr.bf16.mxu0 0
      %2428 = vmatpush2.bf16.msra.mxu0 0
      %2429 = vmatprep.subr.bf16.mxu0 0
      %2430 = vmatpush2.bf16.msra.mxu0 0
      %2431 = vmatprep.subr.bf16.mxu0 0
      %2432 = vmatpush2.bf16.msra.mxu0 0
      %2433 = vmatprep.mubr.bf16.mxu0 0
      %2434 = vmatmul.mubr.bf16.gmra.mxu0 %v2327
      %v2435 = vpop.f32.mrf.mxu0
      %v2436 = vadd.f32 %v2351, %v2435
      %v2437 = vpop.f32.mrf.mxu0
      %v2438 = vpop.f32.mrf.mxu0
      %v2439 = vpop.f32.mrf.mxu0
      %2440 = vdwg.mxu0
      %v2441 = vmax.f32 %v2436, 0.0
      %v2442 = vpack.c.bf16 %v2441, %v2441
      %v2443 = vld [vmem:[#allocation9] sm:$0xf]
      %v2444 = vld [vmem:[#allocation9 + $0x4] sm:$0xf]
      %v2445 = vld [vmem:[#allocation9 + $0x8] sm:$0xf]
      %v2446 = vld [vmem:[#allocation9 + $0xc] sm:$0xf]
      %v2447 = vld [vmem:[#allocation9 + $0x10] sm:$0xf]
      %v2448 = vld [vmem:[#allocation9 + $0x14] sm:$0xf]
      %v2449 = vld [vmem:[#allocation9 + $0x18] sm:$0xf]
      %v2450 = vld [vmem:[#allocation9 + $0x1c] sm:$0xf]
      %v2451 = vld [vmem:[#allocation9 + $0x20] sm:$0xf]
      %v2452 = vld [vmem:[#allocation9 + $0x24] sm:$0xf]
      %v2453 = vld [vmem:[#allocation9 + $0x28] sm:$0xf]
      %v2454 = vld [vmem:[#allocation9 + $0x2c] sm:$0xf]
      %v2455 = vld [vmem:[#allocation9 + $0x30] sm:$0xf]
      %v2456 = vld [vmem:[#allocation9 + $0x34] sm:$0xf]
      %v2457 = vld [vmem:[#allocation9 + $0x38] sm:$0xf]
      %v2458 = vld [vmem:[#allocation9 + $0x3c] sm:$0xf]
      %v2459 = vld [vmem:[%s6] sm:$0x1]
      %v2461 = vlaneseq
      %v2462 = vshrl.u32 %v2461, 7
      %v2463 = vsub.s32 0, %v2462
      %v2464 = vrot.slane %v2459, %v2463
      %v2482 = vunpack.c.l.b16 %v2443
      %v2483 = vunpack.c.l.b16 %v2444
      %v2484 = vunpack.c.l.b16 %v2445
      %v2485 = vunpack.c.l.b16 %v2446
      %v2486 = vunpack.c.l.b16 %v2447
      %v2487 = vunpack.c.l.b16 %v2448
      %v2488 = vunpack.c.l.b16 %v2449
      %v2489 = vunpack.c.l.b16 %v2450
      %v2490 = vunpack.c.l.b16 %v2451
      %v2491 = vunpack.c.l.b16 %v2452
      %v2492 = vunpack.c.l.b16 %v2453
      %v2493 = vunpack.c.l.b16 %v2454
      %v2494 = vunpack.c.l.b16 %v2455
      %v2495 = vunpack.c.l.b16 %v2456
      %v2496 = vunpack.c.l.b16 %v2457
      %v2497 = vunpack.c.l.b16 %v2458
      %v2498 = vpack.c.b16 %v2483, %v2482
      %v2499 = vpack.c.b16 %v2485, %v2484
      %v2500 = vpack.c.b16 %v2487, %v2486
      %v2501 = vpack.c.b16 %v2489, %v2488
      %v2502 = vpack.c.b16 %v2491, %v2490
      %v2503 = vpack.c.b16 %v2493, %v2492
      %v2504 = vpack.c.b16 %v2495, %v2494
      %v2505 = vpack.c.b16 %v2497, %v2496
      %2514 = vmatprep.subr.bf16.mxu0 0
      %2515 = vmatpush1.bf16.msra.mxu0 %v2505
      %2516 = vmatprep.subr.bf16.mxu0 0
      %2517 = vmatpush1.bf16.msra.mxu0 %v2504
      %2518 = vmatprep.subr.bf16.mxu0 0
      %2519 = vmatpush1.bf16.msra.mxu0 %v2503
      %2520 = vmatprep.subr.bf16.mxu0 0
      %2521 = vmatpush1.bf16.msra.mxu0 %v2502
      %2522 = vmatprep.subr.bf16.mxu0 0
      %2523 = vmatpush1.bf16.msra.mxu0 %v2501
      %2524 = vmatprep.subr.bf16.mxu0 0
      %2525 = vmatpush1.bf16.msra.mxu0 %v2500
      %2526 = vmatprep.subr.bf16.mxu0 0
      %2527 = vmatpush1.bf16.msra.mxu0 %v2499
      %2528 = vmatprep.subr.bf16.mxu0 0
      %2529 = vmatpush1.bf16.msra.mxu0 %v2498
      %2530 = vmatprep.subr.bf16.mxu0 0
      %2531 = vmatpush2.bf16.msra.mxu0 0
      %2532 = vmatprep.subr.bf16.mxu0 0
      %2533 = vmatpush2.bf16.msra.mxu0 0
      %2534 = vmatprep.subr.bf16.mxu0 0
      %2535 = vmatpush2.bf16.msra.mxu0 0
      %2536 = vmatprep.subr.bf16.mxu0 0
      %2537 = vmatpush2.bf16.msra.mxu0 0
      %2538 = vmatprep.subr.bf16.mxu0 0
      %2539 = vmatpush2.bf16.msra.mxu0 0
      %2540 = vmatprep.subr.bf16.mxu0 0
      %2541 = vmatpush2.bf16.msra.mxu0 0
      %2542 = vmatprep.subr.bf16.mxu0 0
      %2543 = vmatpush2.bf16.msra.mxu0 0
      %2544 = vmatprep.subr.bf16.mxu0 0
      %2545 = vmatpush2.bf16.msra.mxu0 0
      %2546 = vmatprep.mubr.bf16.mxu0 0
      %2547 = vmatmul.mubr.bf16.gmra.mxu0 %v2442
      %v2548 = vpop.f32.mrf.mxu0
      %v2549 = vadd.f32 %v2464, %v2548
      %v2550 = vpop.f32.mrf.mxu0
      %v2551 = vpop.f32.mrf.mxu0
      %v2552 = vpop.f32.mrf.mxu0
      %2553 = vdwg.mxu0
      %2554 = vst [vmem:[#allocation11] sm:$0xff] %v2549
    $region53: #{tpu_custom_call.1} parent=1 // pred_fallthru
      _
    // Predicated region
    $region54: #{tpu_custom_call.1} parent=1 // pred_check
      _
    $region55: #{tpu_custom_call.1} parent=1 // pred_check_branch
      %2556 = sbr.rel (0) target = $region57
    $region56: #{tpu_custom_call.1} parent=1 // pred_region
      %s2558 = ssub.s32 128, 128
      %2559 = vsyncadd [#allocation5], %s2558
      %s2561 = sshll.u32 [#allocation11], 4
      %s2562 = int_to_ptr.vmem [resolvable:$true] %s2561
      %2564 = dma.vmem_to_hbm [thread:$0]  %s2562, 128, %s7, [#allocation5]
    $region57: #{tpu_custom_call.1} parent=1 // pred_fallthru
      _
    // Predicated region
    $region58: #{tpu_custom_call.1} parent=1 // pred_check
      _
    $region59: #{tpu_custom_call.1} parent=1 // pred_check_branch
      %2566 = sbr.rel (0) target = $region61
    $region60: #{tpu_custom_call.1} parent=1 // pred_region
      %2567 = dma.done [#allocation5], 128
    $region61: #{tpu_custom_call.1} parent=1 // pred_fallthru
      _
    %2568 = vsyncpa [#allocation4], 1
    %2569 = vsyncpa [#allocation7], 1
    %2570 = vsyncpa [#allocation10], 1
    %2571 = vsyncpa [#allocation5], 1

</llo_original>
